<compile_context>
chip_gen: v7x
topology: tpu7x:2x2x1
jax: 0.10.0
libtpu: 0.0.40
codegen_flags: <defaults>
</compile_context>

<pallas_src>
import functools

import jax
import jax.numpy as jnp
import numpy as np
from jax import lax
from jax.experimental import pallas as pl
from jax.experimental.pallas import tpu as pltpu


# ----------------------------------------------------------------------------
# Fused loss kernel.  Grid: (num_blocks,) over blocks of decoder layers.
# All tensors are query-major: the 128-lane axis carries N = B*Q.
# ----------------------------------------------------------------------------
def _hoi_losses_kernel(obj_logits_ref, verb_logits_ref, ps_ref, po_ref,
                       tgt_cls_ref, tgt_verb_ref, ts_ref, to_ref,
                       matched_ref, imgsel_ref, tgt_len_ref, num_ref,
                       out_ref, *, focal, eos_coef, bg_class):
    f32 = jnp.float32
    logits = obj_logits_ref[...].astype(f32)          # (Lb, C1, N) class-major
    Lb, C1, N = logits.shape
    tgt = tgt_cls_ref[...]                            # (1, N) int32
    matched = matched_ref[...].astype(f32)            # (1, N)
    matched3 = matched[:, None, :]                    # (1, 1, N)
    num = num_ref[0, 0]

    # ---- weighted softmax CE over object classes (classes on sublanes) ------
    m = jnp.max(logits, axis=1, keepdims=True)                         # (Lb,1,N)
    z = logits - m
    lse = jnp.log(jnp.sum(jnp.exp(z), axis=1, keepdims=True))          # (Lb,1,N)
    cls_iota = lax.broadcasted_iota(jnp.int32, (1, C1, N), 1)
    sel = cls_iota == tgt[:, None, :]                                  # (1,C1,N)
    z_tgt = jnp.sum(jnp.where(sel, z, 0.0), axis=1, keepdims=True)     # (Lb,1,N)
    nll = lse - z_tgt                                                  # (Lb,1,N)
    # empty_weight is 1 for every class except eos_coef on the background class.
    w = jnp.where(tgt == bg_class, eos_coef, 1.0)                      # (1, N)
    wnll_row = w[:, None, :] * nll                                     # (Lb,1,N)

    # ---- argmax-derived rows (ties are measure-zero; "max at class" test) ---
    correct_row = jnp.where(z_tgt == 0.0, matched3, 0.0)               # (Lb,1,N)
    not_bg = jnp.where(logits[:, C1 - 1:C1, :] < m, 1.0, 0.0)          # (Lb,1,N)
    card_rows = imgsel_ref[...].astype(f32)[None, :, :] * not_bg       # (Lb,B,N)

    # ---- verb label loss (focal or BCE-with-logits), verbs on sublanes ------
    x = verb_logits_ref[...].astype(f32)                               # (Lb,V,N)
    gt = tgt_verb_ref[...].astype(f32)                                 # (V, N)
    gt3 = gt[None, :, :]
    V = x.shape[1]
    if focal:
        pred = jax.nn.sigmoid(x)
        # stable: log(sigmoid(x)) = -softplus(-x); log(1-sigmoid(x)) = logp - x
        logp = -(jnp.maximum(-x, 0.0) + jnp.log(1.0 + jnp.exp(-jnp.abs(x))))
        log1mp = logp - x
        pos = gt3 == 1.0
        elem = jnp.where(pos, logp * jnp.square(1.0 - pred),
                         jnp.where(gt3 < 1.0, log1mp * jnp.square(pred), 0.0))
        num_pos = jnp.sum(jnp.where(gt == 1.0, 1.0, 0.0))
        verb_sum = jnp.sum(jnp.sum(elem, axis=2, keepdims=True),
                           axis=1, keepdims=True)                      # (Lb,1,1)
        # num_pos == 0 => positive contribution is 0, one formula covers both.
        loss_verb = -verb_sum / jnp.maximum(num_pos, 1.0)
    else:
        bce = (jnp.maximum(x, 0.0) - x * gt3
               + jnp.log(1.0 + jnp.exp(-jnp.abs(x))))
        loss_verb = jnp.sum(jnp.sum(bce, axis=2, keepdims=True),
                            axis=1, keepdims=True) / float(V * N)

    # ---- box losses, coordinate-major (coords on sublanes) ------------------
    ps = ps_ref[...].astype(f32)      # (Lb,4,N)
    po = po_ref[...].astype(f32)
    ts = ts_ref[...].astype(f32)      # (4,N)
    to = to_ref[...].astype(f32)
    ts3 = ts[None, :, :]
    to3 = to[None, :, :]
    exist = jnp.where(jnp.sum(jnp.abs(to), axis=0, keepdims=True) > 0.0,
                      matched, 0.0)                                    # (1,N)
    exist3 = exist[:, None, :]

    l1_sub_rows = jnp.abs(ps - ts3) * matched3                         # (Lb,4,N)
    l1_obj_rows = jnp.abs(po - to3) * exist3                           # (Lb,4,N)

    def xyxy(b):
        cx, cy, bw, bh = b[:, 0:1, :], b[:, 1:2, :], b[:, 2:3, :], b[:, 3:4, :]
        return cx - 0.5 * bw, cy - 0.5 * bh, cx + 0.5 * bw, cy + 0.5 * bh

    def giou(a, b):
        ax1, ay1, ax2, ay2 = xyxy(a)
        bx1, by1, bx2, by2 = xyxy(b)
        area_a = (ax2 - ax1) * (ay2 - ay1)
        area_b = (bx2 - bx1) * (by2 - by1)
        iw = jnp.maximum(jnp.minimum(ax2, bx2) - jnp.maximum(ax1, bx1), 0.0)
        ih = jnp.maximum(jnp.minimum(ay2, by2) - jnp.maximum(ay1, by1), 0.0)
        inter = iw * ih
        union = area_a + area_b - inter
        # eps clamps: unmatched queries carry all-zero target boxes; 0/0 NaN
        # would survive the *0 mask.  approx reciprocal lives on the idle EUP.
        iou = inter * pl.reciprocal(jnp.maximum(union, 1e-6), approx=True)
        cw = jnp.maximum(ax2, bx2) - jnp.minimum(ax1, bx1)
        ch = jnp.maximum(ay2, by2) - jnp.minimum(ay1, by1)
        area_c = cw * ch
        return iou - (area_c - union) * pl.reciprocal(
            jnp.maximum(area_c, 1e-6), approx=True)

    gs_row = (1.0 - giou(ps, ts3)) * matched3                          # (Lb,1,N)
    go_row = (1.0 - giou(po, to3)) * exist3                            # (Lb,1,N)

    # ---- fused tail: ONE cross-lane reduce over all per-query partial rows ---
    B = card_rows.shape[1]
    stack = jnp.concatenate(
        [wnll_row, correct_row, card_rows, l1_sub_rows, l1_obj_rows,
         gs_row, go_row], axis=1)                                      # (Lb,12+B,N)
    red = jnp.sum(stack, axis=-1, keepdims=True)                       # (Lb,12+B,1)

    # shared (layer-independent) scalar sums
    sum_w = jnp.sum(w)
    matched_sum = jnp.sum(matched)
    exist_sum = jnp.sum(exist)

    loss_obj_ce = red[:, 0:1, :] / sum_w
    obj_class_error = (100.0
                       - 100.0 * red[:, 1:2, :] / jnp.maximum(matched_sum, 1.0))
    card_pred = red[:, 2:2 + B, :]                                     # (Lb,B,1)
    tlen = tgt_len_ref[...].astype(f32)[None, :, :]                    # (1,B,1)
    card_err = jnp.mean(jnp.abs(card_pred - tlen), axis=1, keepdims=True)
    loss_sub_bbox = jnp.sum(red[:, 2 + B:6 + B, :], axis=1, keepdims=True) / num
    loss_obj_bbox = (jnp.sum(red[:, 6 + B:10 + B, :], axis=1, keepdims=True)
                     / (exist_sum + 1e-4))
    loss_sub_giou = red[:, 10 + B:11 + B, :] / num
    loss_obj_giou = red[:, 11 + B:12 + B, :] / (exist_sum + 1e-4)

    col = jnp.concatenate(
        [loss_obj_ce, obj_class_error, card_err, loss_verb,
         loss_sub_bbox, loss_obj_bbox, loss_sub_giou, loss_obj_giou],
        axis=1)                                                        # (Lb,8,1)
    # lane-dense (unmasked) store; wrapper reads lane 0.
    out_ref[...] = jnp.broadcast_to(col, (Lb, 8, 128))


def _layer_spec(l_blk, *dims):
    nd = len(dims)
    return pl.BlockSpec((l_blk,) + tuple(dims), lambda i: (i,) + (0,) * nd)


def _const_spec(*dims):
    nd = len(dims)
    return pl.BlockSpec(tuple(dims), lambda i: (0,) * nd)


def hoi_losses_fused(obj_logits, verb_logits, pred_sub, pred_obj,
                     tgt_cls, tgt_verb, tgt_sub, tgt_obj,
                     matched, imgsel, tgt_lengths, num_arr,
                     *, loss_type, eos_coef, bg_class):
    """Single pallas_call computing all HOI losses for every decoder layer."""
    L, C1, N = obj_logits.shape
    V = verb_logits.shape[1]
    B = imgsel.shape[0]

    # All decoder layers live in ONE block (one grid step).  If L is even, two
    # balanced steps let v7x's two TensorCores each take half; on v5e/v6e the
    # single-step path is the minimum-overhead choice either way.
    num_blocks = 2 if (L >= 2 and L % 2 == 0) else 1
    l_blk = L // num_blocks

    kernel = functools.partial(_hoi_losses_kernel,
                               focal=(loss_type == 'focal'),
                               eos_coef=float(eos_coef),
                               bg_class=int(bg_class))
    return pl.pallas_call(
        kernel,
        out_shape=jax.ShapeDtypeStruct((L, 8, 128), jnp.float32),
        grid=(num_blocks,),
        in_specs=[
            _layer_spec(l_blk, C1, N),   # pred_obj_logits, class-major
            _layer_spec(l_blk, V, N),    # pred_logits (verbs), verb-major
            _layer_spec(l_blk, 4, N),    # pred_sub_boxes, coordinate-major
            _layer_spec(l_blk, 4, N),    # pred_obj_boxes, coordinate-major
            _const_spec(1, N),           # dense target classes (shared)
            _const_spec(V, N),           # dense target verb labels (shared)
            _const_spec(4, N),           # dense target sub boxes (shared)
            _const_spec(4, N),           # dense target obj boxes (shared)
            _const_spec(1, N),           # matched-query mask (shared)
            _const_spec(B, N),           # query -> image selector (shared)
            _const_spec(B, 1),           # per-image GT counts
            _const_spec(1, 1),           # num normalizer
        ],
        out_specs=pl.BlockSpec((l_blk, 8, 128), lambda i: (i, 0, 0)),
        compiler_params=pltpu.CompilerParams(
            dimension_semantics=("parallel",)),
    )(obj_logits, verb_logits, pred_sub, pred_obj, tgt_cls, tgt_verb,
      tgt_sub, tgt_obj, matched, imgsel, tgt_lengths, num_arr)


# ----------------------------------------------------------------------------
# Plain-JAX glue
# ----------------------------------------------------------------------------
def simple_matcher(outputs, targets, dtype):
    # TODO(synk): Hungarian matching (scipy.optimize.linear_sum_assignment) has
    # no clean Pallas equivalent; use a deterministic identity assignment.
    indices = []
    for t in targets:
        n = int(t['obj_labels'].shape[0])
        idx = jnp.arange(n, dtype=jnp.int32)
        indices.append((idx, idx))
    return indices


class SetCriterionHOI:
    def __init__(self, num_obj_classes, num_queries, num_verb_classes, matcher,
                 weight_dict, eos_coef, losses, loss_type):
        assert loss_type in ('bce', 'focal')
        self.num_obj_classes = num_obj_classes
        self.num_queries = num_queries
        self.num_verb_classes = num_verb_classes
        self.matcher = matcher
        self.weight_dict = weight_dict
        self.eos_coef = eos_coef
        self.losses = losses
        self.loss_type = loss_type
        # Kept only for external consumers / the reference check; the kernel
        # derives per-query CE weights from eos_coef directly.
        ew = jnp.ones((num_obj_classes + 1,), jnp.float32).at[-1].set(eos_coef)
        self.empty_weight = ew.reshape(1, -1)

    # ---- dense matched-target construction (scatter glue, plain JAX) --------
    def _build_dense_targets(self, targets, indices, B, Q, V):
        target_classes = jnp.full((B, Q), self.num_obj_classes, jnp.int32)
        target_verb = jnp.zeros((B, Q, V), jnp.float32)
        tgt_sub = jnp.zeros((B, Q, 4), jnp.float32)
        tgt_obj = jnp.zeros((B, Q, 4), jnp.float32)
        matched = jnp.zeros((B, Q), jnp.float32)
        for b, (src_idx, tgt_idx) in enumerate(indices):
            if int(src_idx.shape[0]) == 0:
                continue
            target_classes = target_classes.at[b, src_idx].set(
                targets[b]['obj_labels'][tgt_idx].astype(jnp.int32))
            target_verb = target_verb.at[b, src_idx].set(
                targets[b]['verb_labels'][tgt_idx].astype(jnp.float32))
            tgt_sub = tgt_sub.at[b, src_idx].set(
                targets[b]['sub_boxes'][tgt_idx].astype(jnp.float32))
            tgt_obj = tgt_obj.at[b, src_idx].set(
                targets[b]['obj_boxes'][tgt_idx].astype(jnp.float32))
            matched = matched.at[b, src_idx].set(1.0)
        return target_classes, target_verb, tgt_sub, tgt_obj, matched

    def forward(self, outputs, targets):
        dtype = outputs['type']
        # TODO(synk): 'att' branch (fed-loss class sampling / load_class_freq)
        # and distributed all_reduce of num_att_or_inter are not implemented.
        assert dtype == 'hoi'
        outputs_without_aux = {k: v for k, v in outputs.items()
                               if k != 'aux_outputs'}
        layers = [outputs_without_aux] + list(outputs.get('aux_outputs', []))
        L = len(layers)
        B, Q, C1 = outputs['pred_obj_logits'].shape
        V = outputs['pred_logits'].shape[-1]
        N = B * Q

        # The identity matcher is output-independent, so the dense matched
        # targets are STRUCTURALLY shared by every decoder layer: build once,
        # bind with constant index_maps (static decision -> survives jit).
        # TODO(synk): a real Hungarian matcher would need per-layer dense
        # targets (stacked with a layer index_map) instead.
        indices = self.matcher(outputs_without_aux, targets, dtype)
        num = max(float(sum(int(t['obj_labels'].shape[0]) for t in targets)), 1.0)
        tc, tv, tsub, tobj, matched = self._build_dense_targets(
            targets, indices, B, Q, V)

        # Query-major re-layouts: class/verb/coord on sublanes, B*Q on lanes.
        tc_q = tc.reshape(1, N)
        tv_q = jnp.swapaxes(tv.reshape(N, V), 0, 1)
        ts_q = jnp.swapaxes(tsub.reshape(N, 4), 0, 1)
        to_q = jnp.swapaxes(tobj.reshape(N, 4), 0, 1)
        m_q = matched.reshape(1, N)

        # TODO(synk): if the decoder already emits stacked (L,B,Q,*) heads, feed
        # them straight in (and fold these transposes into the head projections)
        # instead of re-stacking per-layer dicts here.
        def stack_q(key, d):
            s = jnp.stack([lay[key] for lay in layers]).reshape(L, N, d)
            return jnp.swapaxes(s, -1, -2)

        obj_q = stack_q('pred_obj_logits', C1)   # (L, C1, N)
        verb_q = stack_q('pred_logits', V)       # (L, V, N)
        ps_q = stack_q('pred_sub_boxes', 4)      # (L, 4, N)
        po_q = stack_q('pred_obj_boxes', 4)      # (L, 4, N)

        imgsel = jnp.repeat(jnp.eye(B, dtype=jnp.float32), Q, axis=1)   # (B, N)
        tgt_len = jnp.array([[float(t['obj_labels'].shape[0])] for t in targets],
                            jnp.float32)
        num_arr = jnp.full((1, 1), num, jnp.float32)

        results = hoi_losses_fused(
            obj_q, verb_q, ps_q, po_q, tc_q, tv_q, ts_q, to_q, m_q,
            imgsel, tgt_len, num_arr,
            loss_type=self.loss_type, eos_coef=self.eos_coef,
            bg_class=self.num_obj_classes)

        losses = {}
        for l in range(L):
            sfx = '' if l == 0 else f'_{l - 1}'
            row = results[l, :, 0]
            if 'obj_labels' in self.losses:
                losses['loss_obj_ce' + sfx] = row[0]
                if l == 0:
                    losses['obj_class_error'] = row[1]
            if 'obj_cardinality' in self.losses:
                losses['obj_cardinality_error' + sfx] = row[2]
            if 'verb_labels' in self.losses:
                losses['loss_verb_ce' + sfx] = row[3]
            if 'sub_obj_boxes' in self.losses:
                losses['loss_sub_bbox' + sfx] = row[4]
                losses['loss_obj_bbox' + sfx] = row[5]
                losses['loss_sub_giou' + sfx] = row[6]
                losses['loss_obj_giou' + sfx] = row[7]
        return losses


# ----------------------------------------------------------------------------
# Plain-JAX reference for the main layer (mirrors the PyTorch formulas)
# ----------------------------------------------------------------------------
def _reference_main_losses(outputs, targets, criterion, num):
    logits = outputs['pred_obj_logits'].astype(jnp.float32)
    B, Q, C1 = logits.shape
    V = outputs['pred_logits'].shape[-1]
    tc = jnp.full((B, Q), criterion.num_obj_classes, jnp.int32)
    tverb = jnp.zeros((B, Q, V), jnp.float32)
    tsub = jnp.zeros((B, Q, 4), jnp.float32)
    tobj = jnp.zeros((B, Q, 4), jnp.float32)
    matched = jnp.zeros((B, Q), jnp.float32)
    for b, t in enumerate(targets):
        n = int(t['obj_labels'].shape[0])
        idx = jnp.arange(n)
        tc = tc.at[b, idx].set(t['obj_labels'].astype(jnp.int32))
        tverb = tverb.at[b, idx].set(t['verb_labels'])
        tsub = tsub.at[b, idx].set(t['sub_boxes'])
        tobj = tobj.at[b, idx].set(t['obj_boxes'])
        matched = matched.at[b, idx].set(1.0)
    ref = {}
    logp = jax.nn.log_softmax(logits, -1)
    nll = -jnp.take_along_axis(logp, tc[..., None], axis=-1)[..., 0]
    w = criterion.empty_weight[0][tc]
    ref['loss_obj_ce'] = jnp.sum(w * nll) / jnp.sum(w)
    pred_cls = jnp.argmax(logits, -1)
    acc = (100.0 * jnp.sum(jnp.where(pred_cls == tc, matched, 0.0))
           / jnp.maximum(jnp.sum(matched), 1.0))
    ref['obj_class_error'] = 100.0 - acc
    card_pred = jnp.sum((pred_cls != C1 - 1).astype(jnp.float32), -1)
    tlen = jnp.array([float(t['obj_labels'].shape[0]) for t in targets], jnp.float32)
    ref['obj_cardinality_error'] = jnp.mean(jnp.abs(card_pred - tlen))
    x = outputs['pred_logits'].astype(jnp.float32)
    pred = jax.nn.sigmoid(x)
    pos_loss = jnp.where(tverb == 1.0, jnp.log(pred) * (1 - pred) ** 2, 0.0)
    neg_loss = jnp.where(tverb < 1.0, jnp.log(1 - pred) * pred ** 2, 0.0)
    num_pos = jnp.sum((tverb == 1.0).astype(jnp.float32))
    ref['loss_verb_ce'] = -(jnp.sum(pos_loss) + jnp.sum(neg_loss)) / jnp.maximum(num_pos, 1.0)
    mf = matched.reshape(-1)
    ps = outputs['pred_sub_boxes'].astype(jnp.float32).reshape(-1, 4)
    po = outputs['pred_obj_boxes'].astype(jnp.float32).reshape(-1, 4)
    ts = tsub.reshape(-1, 4)
    to = tobj.reshape(-1, 4)
    exist = jnp.where(jnp.any(to != 0, -1), mf, 0.0)
    ref['loss_sub_bbox'] = jnp.sum(jnp.sum(jnp.abs(ps - ts), -1) * mf) / num
    ref['loss_obj_bbox'] = jnp.sum(jnp.sum(jnp.abs(po - to), -1) * exist) / (jnp.sum(exist) + 1e-4)

    def xyxy(b):
        return jnp.stack([b[:, 0] - 0.5 * b[:, 2], b[:, 1] - 0.5 * b[:, 3],
                          b[:, 0] + 0.5 * b[:, 2], b[:, 1] + 0.5 * b[:, 3]], -1)

    def giou_diag(a, b):
        a, b = xyxy(a), xyxy(b)
        area_a = (a[:, 2] - a[:, 0]) * (a[:, 3] - a[:, 1])
        area_b = (b[:, 2] - b[:, 0]) * (b[:, 3] - b[:, 1])
        iw = jnp.maximum(jnp.minimum(a[:, 2], b[:, 2]) - jnp.maximum(a[:, 0], b[:, 0]), 0.0)
        ih = jnp.maximum(jnp.minimum(a[:, 3], b[:, 3]) - jnp.maximum(a[:, 1], b[:, 1]), 0.0)
        inter = iw * ih
        union = area_a + area_b - inter
        iou = inter / jnp.maximum(union, 1e-6)
        cw = jnp.maximum(a[:, 2], b[:, 2]) - jnp.minimum(a[:, 0], b[:, 0])
        ch = jnp.maximum(a[:, 3], b[:, 3]) - jnp.minimum(a[:, 1], b[:, 1])
        ac = cw * ch
        return iou - (ac - union) / jnp.maximum(ac, 1e-6)

    ref['loss_sub_giou'] = jnp.sum((1.0 - giou_diag(ps, ts)) * mf) / num
    ref['loss_obj_giou'] = jnp.sum((1.0 - giou_diag(po, to)) * exist) / (jnp.sum(exist) + 1e-4)
    return ref


# ----------------------------------------------------------------------------
if __name__ == "__main__":
    key = jax.random.PRNGKey(0)
    keys = iter(jax.random.split(key, 64))

    B, Q = 2, 8
    num_obj_classes = 4          # object logits dim = num_obj_classes + 1 = 5
    num_verb_classes = 6
    n_aux = 2                    # fused kernel blocks over L = 1 + n_aux layers
    n_gt = [3, 2]

    def make_layer():
        return {
            'pred_obj_logits': jax.random.normal(next(keys), (B, Q, num_obj_classes + 1),
                                                 jnp.float32),
            'pred_logits': jax.random.normal(next(keys), (B, Q, num_verb_classes),
                                             jnp.float32),
            'pred_sub_boxes': jax.random.uniform(next(keys), (B, Q, 4), jnp.float32,
                                                 0.1, 0.9),
            'pred_obj_boxes': jax.random.uniform(next(keys), (B, Q, 4), jnp.float32,
                                                 0.1, 0.9),
        }

    outputs = dict(make_layer())
    outputs['type'] = 'hoi'
    outputs['aux_outputs'] = [make_layer() for _ in range(n_aux)]

    targets = []
    for n in n_gt:
        targets.append({
            'obj_labels': jax.random.randint(next(keys), (n,), 0, num_obj_classes),
            'verb_labels': (jax.random.uniform(next(keys), (n, num_verb_classes))
                            > 0.5).astype(jnp.float32),
            'sub_boxes': jax.random.uniform(next(keys), (n, 4), jnp.float32, 0.2, 0.6),
            'obj_boxes': jax.random.uniform(next(keys), (n, 4), jnp.float32, 0.2, 0.6),
        })

    criterion = SetCriterionHOI(
        num_obj_classes=num_obj_classes,
        num_queries=Q,
        num_verb_classes=num_verb_classes,
        matcher=simple_matcher,
        weight_dict={},
        eos_coef=0.1,
        losses=['obj_labels', 'obj_cardinality', 'verb_labels', 'sub_obj_boxes'],
        loss_type='focal',
    )

    losses = criterion.forward(outputs, targets)
    losses = {k: jax.block_until_ready(v) for k, v in losses.items()}

    for k, v in sorted(losses.items()):
        assert jnp.isfinite(v).all(), f"non-finite loss {k}"

    # Cross-check the main-layer losses against the plain-JAX reference.
    # Tolerance 2e-3 covers the approx-EUP reciprocal used in the GIoU terms.
    num = max(float(sum(n_gt)), 1.0)
    ref = _reference_main_losses(outputs, targets, criterion, num)
    for k, v in ref.items():
        np.testing.assert_allclose(float(losses[k]), float(v), rtol=2e-3, atol=2e-3,
                                   err_msg=f"mismatch in {k}")

    print("KERNEL_OK")
</pallas_src>

<mosaic_0001>
module attributes {stable_mosaic.version = 11 : i64} {
  func.func @_hoi_losses_kernel(%arg0: i32, %arg1: memref<3x5x16xf32, #tpu.memory_space<vmem>>, %arg2: memref<3x6x16xf32, #tpu.memory_space<vmem>>, %arg3: memref<3x4x16xf32, #tpu.memory_space<vmem>>, %arg4: memref<3x4x16xf32, #tpu.memory_space<vmem>>, %arg5: memref<1x16xi32, #tpu.memory_space<vmem>>, %arg6: memref<6x16xf32, #tpu.memory_space<vmem>>, %arg7: memref<4x16xf32, #tpu.memory_space<vmem>>, %arg8: memref<4x16xf32, #tpu.memory_space<vmem>>, %arg9: memref<1x16xf32, #tpu.memory_space<vmem>>, %arg10: memref<2x16xf32, #tpu.memory_space<vmem>>, %arg11: memref<2x1xf32, #tpu.memory_space<vmem>>, %arg12: memref<1x1xf32, #tpu.memory_space<vmem>>, %arg13: memref<3x8x128xf32, #tpu.memory_space<vmem>>) attributes {dimension_semantics = [#tpu.dimension_semantics<parallel>], iteration_bounds = array<i64: 1>, scalar_prefetch = 0 : i64, scratch_operands = 0 : i64, tpu.core_type = #tpu.core_type<tc>, window_params = [{transform_indices = @transform_0, window_bounds = array<i64: 3, 5, 16>}, {transform_indices = @transform_1, window_bounds = array<i64: 3, 6, 16>}, {transform_indices = @transform_2, window_bounds = array<i64: 3, 4, 16>}, {transform_indices = @transform_3, window_bounds = array<i64: 3, 4, 16>}, {pipeline_mode = #tpu.pipeline_mode<synchronous>, transform_indices = @transform_4, window_bounds = array<i64: 1, 16>}, {pipeline_mode = #tpu.pipeline_mode<synchronous>, transform_indices = @transform_5, window_bounds = array<i64: 6, 16>}, {pipeline_mode = #tpu.pipeline_mode<synchronous>, transform_indices = @transform_6, window_bounds = array<i64: 4, 16>}, {pipeline_mode = #tpu.pipeline_mode<synchronous>, transform_indices = @transform_7, window_bounds = array<i64: 4, 16>}, {pipeline_mode = #tpu.pipeline_mode<synchronous>, transform_indices = @transform_8, window_bounds = array<i64: 1, 16>}, {pipeline_mode = #tpu.pipeline_mode<synchronous>, transform_indices = @transform_9, window_bounds = array<i64: 2, 16>}, {pipeline_mode = #tpu.pipeline_mode<synchronous>, transform_indices = @transform_10, window_bounds = array<i64: 2, 1>}, {pipeline_mode = #tpu.pipeline_mode<synchronous>, transform_indices = @transform_11, window_bounds = array<i64: 1, 1>}, {transform_indices = @transform_12, window_bounds = array<i64: 3, 8, 128>}]} {
    %c0 = arith.constant 0 : index
    %c0_0 = arith.constant 0 : index
    %c0_1 = arith.constant 0 : index
    %0 = vector.load %arg1[%c0, %c0_0, %c0_1] : memref<3x5x16xf32, #tpu.memory_space<vmem>>, vector<3x5x16xf32>
    %c0_2 = arith.constant 0 : index
    %c0_3 = arith.constant 0 : index
    %1 = vector.load %arg5[%c0_2, %c0_3] : memref<1x16xi32, #tpu.memory_space<vmem>>, vector<1x16xi32>
    %c0_4 = arith.constant 0 : index
    %c0_5 = arith.constant 0 : index
    %2 = vector.load %arg9[%c0_4, %c0_5] : memref<1x16xf32, #tpu.memory_space<vmem>>, vector<1x16xf32>
    %3 = vector.shape_cast %2 : vector<1x16xf32> to vector<1x1x16xf32>
    %c0_6 = arith.constant 0 : index
    %c0_7 = arith.constant 0 : index
    %4 = vector.load %arg12[%c0_6, %c0_7] : memref<1x1xf32, #tpu.memory_space<vmem>>, vector<1x1xf32>
    %5 = vector.extract %4[0, 0] : f32 from vector<1x1xf32>
    %cst = arith.constant dense<0xFF800000> : vector<3x16xf32>
    %6 = vector.multi_reduction <maximumf>, %0, %cst [1] : vector<3x5x16xf32> to vector<3x16xf32>
    %7 = vector.shape_cast %6 : vector<3x16xf32> to vector<3x1x16xf32>
    %8 = vector.broadcast %7 : vector<3x1x16xf32> to vector<3x5x16xf32>
    %9 = arith.subf %0, %8 : vector<3x5x16xf32>
    %10 = math.exp %9 : vector<3x5x16xf32>
    %cst_8 = arith.constant dense<0.000000e+00> : vector<3x16xf32>
    %11 = vector.multi_reduction <add>, %10, %cst_8 [1] : vector<3x5x16xf32> to vector<3x16xf32>
    %12 = vector.shape_cast %11 : vector<3x16xf32> to vector<3x1x16xf32>
    %13 = math.log %12 : vector<3x1x16xf32>
    %14 = tpu.iota {dimensions = array<i32: 1>} : vector<1x5x16xi32>
    %15 = vector.shape_cast %1 : vector<1x16xi32> to vector<1x1x16xi32>
    %16 = vector.broadcast %15 : vector<1x1x16xi32> to vector<1x5x16xi32>
    %17 = arith.cmpi eq, %14, %16 : vector<1x5x16xi32>
    %cst_9 = arith.constant 0.000000e+00 : f32
    %18 = vector.shape_cast %17 : vector<1x5x16xi1> to vector<1x5x16xi1>
    %19 = vector.broadcast %18 : vector<1x5x16xi1> to vector<3x5x16xi1>
    %20 = vector.broadcast %cst_9 : f32 to vector<3x5x16xf32>
    %21 = arith.select %19, %9, %20 : vector<3x5x16xi1>, vector<3x5x16xf32>
    %cst_10 = arith.constant dense<0.000000e+00> : vector<3x16xf32>
    %22 = vector.multi_reduction <add>, %21, %cst_10 [1] : vector<3x5x16xf32> to vector<3x16xf32>
    %23 = vector.shape_cast %22 : vector<3x16xf32> to vector<3x1x16xf32>
    %24 = arith.subf %13, %23 : vector<3x1x16xf32>
    %c4_i32 = arith.constant 4 : i32
    %25 = vector.broadcast %c4_i32 : i32 to vector<1x16xi32>
    %26 = arith.cmpi eq, %1, %25 : vector<1x16xi32>
    %cst_11 = arith.constant 1.000000e-01 : f32
    %cst_12 = arith.constant 1.000000e+00 : f32
    %27 = vector.broadcast %cst_11 : f32 to vector<1x16xf32>
    %28 = vector.broadcast %cst_12 : f32 to vector<1x16xf32>
    %29 = arith.select %26, %27, %28 : vector<1x16xi1>, vector<1x16xf32>
    %30 = vector.shape_cast %29 : vector<1x16xf32> to vector<1x1x16xf32>
    %31 = vector.broadcast %30 : vector<1x1x16xf32> to vector<3x1x16xf32>
    %32 = arith.mulf %31, %24 : vector<3x1x16xf32>
    %cst_13 = arith.constant 0.000000e+00 : f32
    %33 = vector.broadcast %cst_13 : f32 to vector<3x1x16xf32>
    %34 = arith.cmpf oeq, %23, %33 : vector<3x1x16xf32>
    %cst_14 = arith.constant 0.000000e+00 : f32
    %35 = vector.shape_cast %3 : vector<1x1x16xf32> to vector<1x1x16xf32>
    %36 = vector.broadcast %35 : vector<1x1x16xf32> to vector<3x1x16xf32>
    %37 = vector.broadcast %cst_14 : f32 to vector<3x1x16xf32>
    %38 = arith.select %34, %36, %37 : vector<3x1x16xi1>, vector<3x1x16xf32>
    %39 = vector.extract_strided_slice %0 {offsets = [0, 4, 0], sizes = [3, 1, 16], strides = [1, 1, 1]} : vector<3x5x16xf32> to vector<3x1x16xf32>
    %40 = arith.cmpf olt, %39, %7 : vector<3x1x16xf32>
    %cst_15 = arith.constant 1.000000e+00 : f32
    %cst_16 = arith.constant 0.000000e+00 : f32
    %41 = vector.broadcast %cst_15 : f32 to vector<3x1x16xf32>
    %42 = vector.broadcast %cst_16 : f32 to vector<3x1x16xf32>
    %43 = arith.select %40, %41, %42 : vector<3x1x16xi1>, vector<3x1x16xf32>
    %c0_17 = arith.constant 0 : index
    %c0_18 = arith.constant 0 : index
    %44 = vector.load %arg10[%c0_17, %c0_18] : memref<2x16xf32, #tpu.memory_space<vmem>>, vector<2x16xf32>
    %45 = vector.shape_cast %44 : vector<2x16xf32> to vector<1x2x16xf32>
    %46 = vector.broadcast %45 : vector<1x2x16xf32> to vector<3x2x16xf32>
    %47 = vector.broadcast %43 : vector<3x1x16xf32> to vector<3x2x16xf32>
    %48 = arith.mulf %46, %47 : vector<3x2x16xf32>
    %c0_19 = arith.constant 0 : index
    %c0_20 = arith.constant 0 : index
    %c0_21 = arith.constant 0 : index
    %49 = vector.load %arg2[%c0_19, %c0_20, %c0_21] : memref<3x6x16xf32, #tpu.memory_space<vmem>>, vector<3x6x16xf32>
    %c0_22 = arith.constant 0 : index
    %c0_23 = arith.constant 0 : index
    %50 = vector.load %arg6[%c0_22, %c0_23] : memref<6x16xf32, #tpu.memory_space<vmem>>, vector<6x16xf32>
    %51 = vector.shape_cast %50 : vector<6x16xf32> to vector<1x6x16xf32>
    %52 = arith.negf %49 : vector<3x6x16xf32>
    %53 = math.exp %52 : vector<3x6x16xf32>
    %cst_24 = arith.constant 1.000000e+00 : f32
    %54 = vector.broadcast %cst_24 : f32 to vector<3x6x16xf32>
    %55 = arith.addf %54, %53 : vector<3x6x16xf32>
    %56 = arith.divf %54, %55 : vector<3x6x16xf32>
    %cst_25 = arith.constant 0.000000e+00 : f32
    %57 = vector.broadcast %cst_25 : f32 to vector<3x6x16xf32>
    %58 = arith.subf %57, %49 : vector<3x6x16xf32>
    %cst_26 = arith.constant 0.000000e+00 : f32
    %59 = vector.broadcast %cst_26 : f32 to vector<3x6x16xf32>
    %60 = arith.maximumf %58, %59 : vector<3x6x16xf32>
    %61 = math.absf %49 : vector<3x6x16xf32>
    %cst_27 = arith.constant 0.000000e+00 : f32
    %62 = vector.broadcast %cst_27 : f32 to vector<3x6x16xf32>
    %63 = arith.subf %62, %61 : vector<3x6x16xf32>
    %64 = math.exp %63 : vector<3x6x16xf32>
    %cst_28 = arith.constant 1.000000e+00 : f32
    %65 = vector.broadcast %cst_28 : f32 to vector<3x6x16xf32>
    %66 = arith.addf %65, %64 : vector<3x6x16xf32>
    %67 = math.log %66 : vector<3x6x16xf32>
    %68 = arith.addf %60, %67 : vector<3x6x16xf32>
    %cst_29 = arith.constant 0.000000e+00 : f32
    %69 = vector.broadcast %cst_29 : f32 to vector<3x6x16xf32>
    %70 = arith.subf %69, %68 : vector<3x6x16xf32>
    %71 = arith.subf %70, %49 : vector<3x6x16xf32>
    %cst_30 = arith.constant 1.000000e+00 : f32
    %72 = vector.broadcast %cst_30 : f32 to vector<1x6x16xf32>
    %73 = arith.cmpf oeq, %51, %72 : vector<1x6x16xf32>
    %cst_31 = arith.constant 1.000000e+00 : f32
    %74 = vector.broadcast %cst_31 : f32 to vector<3x6x16xf32>
    %75 = arith.subf %74, %56 : vector<3x6x16xf32>
    %76 = arith.mulf %75, %75 : vector<3x6x16xf32>
    %77 = arith.mulf %70, %76 : vector<3x6x16xf32>
    %cst_32 = arith.constant 1.000000e+00 : f32
    %78 = vector.broadcast %cst_32 : f32 to vector<1x6x16xf32>
    %79 = arith.cmpf olt, %51, %78 : vector<1x6x16xf32>
    %80 = arith.mulf %56, %56 : vector<3x6x16xf32>
    %81 = arith.mulf %71, %80 : vector<3x6x16xf32>
    %cst_33 = arith.constant 0.000000e+00 : f32
    %82 = vector.shape_cast %79 : vector<1x6x16xi1> to vector<1x6x16xi1>
    %83 = vector.broadcast %82 : vector<1x6x16xi1> to vector<3x6x16xi1>
    %84 = vector.broadcast %cst_33 : f32 to vector<3x6x16xf32>
    %85 = arith.select %83, %81, %84 : vector<3x6x16xi1>, vector<3x6x16xf32>
    %86 = vector.shape_cast %73 : vector<1x6x16xi1> to vector<1x6x16xi1>
    %87 = vector.broadcast %86 : vector<1x6x16xi1> to vector<3x6x16xi1>
    %88 = arith.select %87, %77, %85 : vector<3x6x16xi1>, vector<3x6x16xf32>
    %cst_34 = arith.constant 1.000000e+00 : f32
    %89 = vector.broadcast %cst_34 : f32 to vector<6x16xf32>
    %90 = arith.cmpf oeq, %50, %89 : vector<6x16xf32>
    %cst_35 = arith.constant 1.000000e+00 : f32
    %cst_36 = arith.constant 0.000000e+00 : f32
    %91 = vector.broadcast %cst_35 : f32 to vector<6x16xf32>
    %92 = vector.broadcast %cst_36 : f32 to vector<6x16xf32>
    %93 = arith.select %90, %91, %92 : vector<6x16xi1>, vector<6x16xf32>
    %94 = vector.shape_cast %93 : vector<6x16xf32> to vector<1x6x16xf32>
    %cst_37 = arith.constant dense<0.000000e+00> : vector<1xf32>
    %95 = vector.multi_reduction <add>, %94, %cst_37 [1, 2] : vector<1x6x16xf32> to vector<1xf32>
    %96 = vector.shape_cast %95 : vector<1xf32> to vector<1x1x1xf32>
    %97 = vector.extract %96[0, 0, 0] : f32 from vector<1x1x1xf32>
    %cst_38 = arith.constant dense<0.000000e+00> : vector<3x6xf32>
    %98 = vector.multi_reduction <add>, %88, %cst_38 [2] : vector<3x6x16xf32> to vector<3x6xf32>
    %99 = vector.shape_cast %98 : vector<3x6xf32> to vector<3x6x1xf32>
    %cst_39 = arith.constant dense<0.000000e+00> : vector<3x1xf32>
    %100 = vector.multi_reduction <add>, %99, %cst_39 [1] : vector<3x6x1xf32> to vector<3x1xf32>
    %101 = vector.shape_cast %100 : vector<3x1xf32> to vector<3x1x1xf32>
    %cst_40 = arith.constant 0.000000e+00 : f32
    %102 = vector.broadcast %cst_40 : f32 to vector<3x1x1xf32>
    %103 = arith.subf %102, %101 : vector<3x1x1xf32>
    %cst_41 = arith.constant 1.000000e+00 : f32
    %104 = arith.maximumf %97, %cst_41 : f32
    %105 = vector.broadcast %104 : f32 to vector<3x1x1xf32>
    %106 = arith.divf %103, %105 : vector<3x1x1xf32>
    %c0_42 = arith.constant 0 : index
    %c0_43 = arith.constant 0 : index
    %c0_44 = arith.constant 0 : index
    %107 = vector.load %arg3[%c0_42, %c0_43, %c0_44] : memref<3x4x16xf32, #tpu.memory_space<vmem>>, vector<3x4x16xf32>
    %c0_45 = arith.constant 0 : index
    %c0_46 = arith.constant 0 : index
    %c0_47 = arith.constant 0 : index
    %108 = vector.load %arg4[%c0_45, %c0_46, %c0_47] : memref<3x4x16xf32, #tpu.memory_space<vmem>>, vector<3x4x16xf32>
    %c0_48 = arith.constant 0 : index
    %c0_49 = arith.constant 0 : index
    %109 = vector.load %arg7[%c0_48, %c0_49] : memref<4x16xf32, #tpu.memory_space<vmem>>, vector<4x16xf32>
    %c0_50 = arith.constant 0 : index
    %c0_51 = arith.constant 0 : index
    %110 = vector.load %arg8[%c0_50, %c0_51] : memref<4x16xf32, #tpu.memory_space<vmem>>, vector<4x16xf32>
    %111 = vector.shape_cast %109 : vector<4x16xf32> to vector<1x4x16xf32>
    %112 = vector.shape_cast %110 : vector<4x16xf32> to vector<1x4x16xf32>
    %113 = math.absf %110 : vector<4x16xf32>
    %cst_52 = arith.constant dense<0.000000e+00> : vector<16xf32>
    %114 = vector.multi_reduction <add>, %113, %cst_52 [0] : vector<4x16xf32> to vector<16xf32>
    %115 = vector.shape_cast %114 : vector<16xf32> to vector<1x16xf32>
    %cst_53 = arith.constant 0.000000e+00 : f32
    %116 = vector.broadcast %cst_53 : f32 to vector<1x16xf32>
    %117 = arith.cmpf ogt, %115, %116 : vector<1x16xf32>
    %cst_54 = arith.constant 0.000000e+00 : f32
    %118 = vector.broadcast %cst_54 : f32 to vector<1x16xf32>
    %119 = arith.select %117, %2, %118 : vector<1x16xi1>, vector<1x16xf32>
    %120 = vector.shape_cast %119 : vector<1x16xf32> to vector<1x1x16xf32>
    %121 = vector.broadcast %111 : vector<1x4x16xf32> to vector<3x4x16xf32>
    %122 = arith.subf %107, %121 : vector<3x4x16xf32>
    %123 = math.absf %122 : vector<3x4x16xf32>
    %124 = vector.broadcast %3 : vector<1x1x16xf32> to vector<3x4x16xf32>
    %125 = arith.mulf %123, %124 : vector<3x4x16xf32>
    %126 = vector.broadcast %112 : vector<1x4x16xf32> to vector<3x4x16xf32>
    %127 = arith.subf %108, %126 : vector<3x4x16xf32>
    %128 = math.absf %127 : vector<3x4x16xf32>
    %129 = vector.broadcast %120 : vector<1x1x16xf32> to vector<3x4x16xf32>
    %130 = arith.mulf %128, %129 : vector<3x4x16xf32>
    %131 = vector.extract_strided_slice %107 {offsets = [0, 0, 0], sizes = [3, 1, 16], strides = [1, 1, 1]} : vector<3x4x16xf32> to vector<3x1x16xf32>
    %132 = vector.extract_strided_slice %107 {offsets = [0, 1, 0], sizes = [3, 1, 16], strides = [1, 1, 1]} : vector<3x4x16xf32> to vector<3x1x16xf32>
    %133 = vector.extract_strided_slice %107 {offsets = [0, 2, 0], sizes = [3, 1, 16], strides = [1, 1, 1]} : vector<3x4x16xf32> to vector<3x1x16xf32>
    %134 = vector.extract_strided_slice %107 {offsets = [0, 3, 0], sizes = [3, 1, 16], strides = [1, 1, 1]} : vector<3x4x16xf32> to vector<3x1x16xf32>
    %cst_55 = arith.constant 5.000000e-01 : f32
    %135 = vector.broadcast %cst_55 : f32 to vector<3x1x16xf32>
    %136 = arith.mulf %135, %133 : vector<3x1x16xf32>
    %137 = arith.subf %131, %136 : vector<3x1x16xf32>
    %cst_56 = arith.constant 5.000000e-01 : f32
    %138 = vector.broadcast %cst_56 : f32 to vector<3x1x16xf32>
    %139 = arith.mulf %138, %134 : vector<3x1x16xf32>
    %140 = arith.subf %132, %139 : vector<3x1x16xf32>
    %cst_57 = arith.constant 5.000000e-01 : f32
    %141 = vector.broadcast %cst_57 : f32 to vector<3x1x16xf32>
    %142 = arith.mulf %141, %133 : vector<3x1x16xf32>
    %143 = arith.addf %131, %142 : vector<3x1x16xf32>
    %cst_58 = arith.constant 5.000000e-01 : f32
    %144 = vector.broadcast %cst_58 : f32 to vector<3x1x16xf32>
    %145 = arith.mulf %144, %134 : vector<3x1x16xf32>
    %146 = arith.addf %132, %145 : vector<3x1x16xf32>
    %147 = vector.extract_strided_slice %111 {offsets = [0, 0, 0], sizes = [1, 1, 16], strides = [1, 1, 1]} : vector<1x4x16xf32> to vector<1x1x16xf32>
    %148 = vector.extract_strided_slice %111 {offsets = [0, 1, 0], sizes = [1, 1, 16], strides = [1, 1, 1]} : vector<1x4x16xf32> to vector<1x1x16xf32>
    %149 = vector.extract_strided_slice %111 {offsets = [0, 2, 0], sizes = [1, 1, 16], strides = [1, 1, 1]} : vector<1x4x16xf32> to vector<1x1x16xf32>
    %150 = vector.extract_strided_slice %111 {offsets = [0, 3, 0], sizes = [1, 1, 16], strides = [1, 1, 1]} : vector<1x4x16xf32> to vector<1x1x16xf32>
    %cst_59 = arith.constant 5.000000e-01 : f32
    %151 = vector.broadcast %cst_59 : f32 to vector<1x1x16xf32>
    %152 = arith.mulf %151, %149 : vector<1x1x16xf32>
    %153 = arith.subf %147, %152 : vector<1x1x16xf32>
    %cst_60 = arith.constant 5.000000e-01 : f32
    %154 = vector.broadcast %cst_60 : f32 to vector<1x1x16xf32>
    %155 = arith.mulf %154, %150 : vector<1x1x16xf32>
    %156 = arith.subf %148, %155 : vector<1x1x16xf32>
    %cst_61 = arith.constant 5.000000e-01 : f32
    %157 = vector.broadcast %cst_61 : f32 to vector<1x1x16xf32>
    %158 = arith.mulf %157, %149 : vector<1x1x16xf32>
    %159 = arith.addf %147, %158 : vector<1x1x16xf32>
    %cst_62 = arith.constant 5.000000e-01 : f32
    %160 = vector.broadcast %cst_62 : f32 to vector<1x1x16xf32>
    %161 = arith.mulf %160, %150 : vector<1x1x16xf32>
    %162 = arith.addf %148, %161 : vector<1x1x16xf32>
    %163 = arith.subf %143, %137 : vector<3x1x16xf32>
    %164 = arith.subf %146, %140 : vector<3x1x16xf32>
    %165 = arith.mulf %163, %164 : vector<3x1x16xf32>
    %166 = arith.subf %159, %153 : vector<1x1x16xf32>
    %167 = arith.subf %162, %156 : vector<1x1x16xf32>
    %168 = arith.mulf %166, %167 : vector<1x1x16xf32>
    %169 = vector.broadcast %159 : vector<1x1x16xf32> to vector<3x1x16xf32>
    %170 = arith.minimumf %143, %169 : vector<3x1x16xf32>
    %171 = vector.broadcast %153 : vector<1x1x16xf32> to vector<3x1x16xf32>
    %172 = arith.maximumf %137, %171 : vector<3x1x16xf32>
    %173 = arith.subf %170, %172 : vector<3x1x16xf32>
    %cst_63 = arith.constant 0.000000e+00 : f32
    %174 = vector.broadcast %cst_63 : f32 to vector<3x1x16xf32>
    %175 = arith.maximumf %173, %174 : vector<3x1x16xf32>
    %176 = vector.broadcast %162 : vector<1x1x16xf32> to vector<3x1x16xf32>
    %177 = arith.minimumf %146, %176 : vector<3x1x16xf32>
    %178 = vector.broadcast %156 : vector<1x1x16xf32> to vector<3x1x16xf32>
    %179 = arith.maximumf %140, %178 : vector<3x1x16xf32>
    %180 = arith.subf %177, %179 : vector<3x1x16xf32>
    %cst_64 = arith.constant 0.000000e+00 : f32
    %181 = vector.broadcast %cst_64 : f32 to vector<3x1x16xf32>
    %182 = arith.maximumf %180, %181 : vector<3x1x16xf32>
    %183 = arith.mulf %175, %182 : vector<3x1x16xf32>
    %184 = vector.broadcast %168 : vector<1x1x16xf32> to vector<3x1x16xf32>
    %185 = arith.addf %165, %184 : vector<3x1x16xf32>
    %186 = arith.subf %185, %183 : vector<3x1x16xf32>
    %cst_65 = arith.constant 9.99999997E-7 : f32
    %187 = vector.broadcast %cst_65 : f32 to vector<3x1x16xf32>
    %188 = arith.maximumf %186, %187 : vector<3x1x16xf32>
    %189 = tpu.reciprocal %188 {approx = true} : vector<3x1x16xf32> -> vector<3x1x16xf32>
    %190 = arith.mulf %183, %189 : vector<3x1x16xf32>
    %191 = vector.broadcast %159 : vector<1x1x16xf32> to vector<3x1x16xf32>
    %192 = arith.maximumf %143, %191 : vector<3x1x16xf32>
    %193 = vector.broadcast %153 : vector<1x1x16xf32> to vector<3x1x16xf32>
    %194 = arith.minimumf %137, %193 : vector<3x1x16xf32>
    %195 = arith.subf %192, %194 : vector<3x1x16xf32>
    %196 = vector.broadcast %162 : vector<1x1x16xf32> to vector<3x1x16xf32>
    %197 = arith.maximumf %146, %196 : vector<3x1x16xf32>
    %198 = vector.broadcast %156 : vector<1x1x16xf32> to vector<3x1x16xf32>
    %199 = arith.minimumf %140, %198 : vector<3x1x16xf32>
    %200 = arith.subf %197, %199 : vector<3x1x16xf32>
    %201 = arith.mulf %195, %200 : vector<3x1x16xf32>
    %202 = arith.subf %201, %186 : vector<3x1x16xf32>
    %cst_66 = arith.constant 9.99999997E-7 : f32
    %203 = vector.broadcast %cst_66 : f32 to vector<3x1x16xf32>
    %204 = arith.maximumf %201, %203 : vector<3x1x16xf32>
    %205 = tpu.reciprocal %204 {approx = true} : vector<3x1x16xf32> -> vector<3x1x16xf32>
    %206 = arith.mulf %202, %205 : vector<3x1x16xf32>
    %207 = arith.subf %190, %206 : vector<3x1x16xf32>
    %cst_67 = arith.constant 1.000000e+00 : f32
    %208 = vector.broadcast %cst_67 : f32 to vector<3x1x16xf32>
    %209 = arith.subf %208, %207 : vector<3x1x16xf32>
    %210 = vector.broadcast %3 : vector<1x1x16xf32> to vector<3x1x16xf32>
    %211 = arith.mulf %209, %210 : vector<3x1x16xf32>
    %212 = vector.extract_strided_slice %108 {offsets = [0, 0, 0], sizes = [3, 1, 16], strides = [1, 1, 1]} : vector<3x4x16xf32> to vector<3x1x16xf32>
    %213 = vector.extract_strided_slice %108 {offsets = [0, 1, 0], sizes = [3, 1, 16], strides = [1, 1, 1]} : vector<3x4x16xf32> to vector<3x1x16xf32>
    %214 = vector.extract_strided_slice %108 {offsets = [0, 2, 0], sizes = [3, 1, 16], strides = [1, 1, 1]} : vector<3x4x16xf32> to vector<3x1x16xf32>
    %215 = vector.extract_strided_slice %108 {offsets = [0, 3, 0], sizes = [3, 1, 16], strides = [1, 1, 1]} : vector<3x4x16xf32> to vector<3x1x16xf32>
    %cst_68 = arith.constant 5.000000e-01 : f32
    %216 = vector.broadcast %cst_68 : f32 to vector<3x1x16xf32>
    %217 = arith.mulf %216, %214 : vector<3x1x16xf32>
    %218 = arith.subf %212, %217 : vector<3x1x16xf32>
    %cst_69 = arith.constant 5.000000e-01 : f32
    %219 = vector.broadcast %cst_69 : f32 to vector<3x1x16xf32>
    %220 = arith.mulf %219, %215 : vector<3x1x16xf32>
    %221 = arith.subf %213, %220 : vector<3x1x16xf32>
    %cst_70 = arith.constant 5.000000e-01 : f32
    %222 = vector.broadcast %cst_70 : f32 to vector<3x1x16xf32>
    %223 = arith.mulf %222, %214 : vector<3x1x16xf32>
    %224 = arith.addf %212, %223 : vector<3x1x16xf32>
    %cst_71 = arith.constant 5.000000e-01 : f32
    %225 = vector.broadcast %cst_71 : f32 to vector<3x1x16xf32>
    %226 = arith.mulf %225, %215 : vector<3x1x16xf32>
    %227 = arith.addf %213, %226 : vector<3x1x16xf32>
    %228 = vector.extract_strided_slice %112 {offsets = [0, 0, 0], sizes = [1, 1, 16], strides = [1, 1, 1]} : vector<1x4x16xf32> to vector<1x1x16xf32>
    %229 = vector.extract_strided_slice %112 {offsets = [0, 1, 0], sizes = [1, 1, 16], strides = [1, 1, 1]} : vector<1x4x16xf32> to vector<1x1x16xf32>
    %230 = vector.extract_strided_slice %112 {offsets = [0, 2, 0], sizes = [1, 1, 16], strides = [1, 1, 1]} : vector<1x4x16xf32> to vector<1x1x16xf32>
    %231 = vector.extract_strided_slice %112 {offsets = [0, 3, 0], sizes = [1, 1, 16], strides = [1, 1, 1]} : vector<1x4x16xf32> to vector<1x1x16xf32>
    %cst_72 = arith.constant 5.000000e-01 : f32
    %232 = vector.broadcast %cst_72 : f32 to vector<1x1x16xf32>
    %233 = arith.mulf %232, %230 : vector<1x1x16xf32>
    %234 = arith.subf %228, %233 : vector<1x1x16xf32>
    %cst_73 = arith.constant 5.000000e-01 : f32
    %235 = vector.broadcast %cst_73 : f32 to vector<1x1x16xf32>
    %236 = arith.mulf %235, %231 : vector<1x1x16xf32>
    %237 = arith.subf %229, %236 : vector<1x1x16xf32>
    %cst_74 = arith.constant 5.000000e-01 : f32
    %238 = vector.broadcast %cst_74 : f32 to vector<1x1x16xf32>
    %239 = arith.mulf %238, %230 : vector<1x1x16xf32>
    %240 = arith.addf %228, %239 : vector<1x1x16xf32>
    %cst_75 = arith.constant 5.000000e-01 : f32
    %241 = vector.broadcast %cst_75 : f32 to vector<1x1x16xf32>
    %242 = arith.mulf %241, %231 : vector<1x1x16xf32>
    %243 = arith.addf %229, %242 : vector<1x1x16xf32>
    %244 = arith.subf %224, %218 : vector<3x1x16xf32>
    %245 = arith.subf %227, %221 : vector<3x1x16xf32>
    %246 = arith.mulf %244, %245 : vector<3x1x16xf32>
    %247 = arith.subf %240, %234 : vector<1x1x16xf32>
    %248 = arith.subf %243, %237 : vector<1x1x16xf32>
    %249 = arith.mulf %247, %248 : vector<1x1x16xf32>
    %250 = vector.broadcast %240 : vector<1x1x16xf32> to vector<3x1x16xf32>
    %251 = arith.minimumf %224, %250 : vector<3x1x16xf32>
    %252 = vector.broadcast %234 : vector<1x1x16xf32> to vector<3x1x16xf32>
    %253 = arith.maximumf %218, %252 : vector<3x1x16xf32>
    %254 = arith.subf %251, %253 : vector<3x1x16xf32>
    %cst_76 = arith.constant 0.000000e+00 : f32
    %255 = vector.broadcast %cst_76 : f32 to vector<3x1x16xf32>
    %256 = arith.maximumf %254, %255 : vector<3x1x16xf32>
    %257 = vector.broadcast %243 : vector<1x1x16xf32> to vector<3x1x16xf32>
    %258 = arith.minimumf %227, %257 : vector<3x1x16xf32>
    %259 = vector.broadcast %237 : vector<1x1x16xf32> to vector<3x1x16xf32>
    %260 = arith.maximumf %221, %259 : vector<3x1x16xf32>
    %261 = arith.subf %258, %260 : vector<3x1x16xf32>
    %cst_77 = arith.constant 0.000000e+00 : f32
    %262 = vector.broadcast %cst_77 : f32 to vector<3x1x16xf32>
    %263 = arith.maximumf %261, %262 : vector<3x1x16xf32>
    %264 = arith.mulf %256, %263 : vector<3x1x16xf32>
    %265 = vector.broadcast %249 : vector<1x1x16xf32> to vector<3x1x16xf32>
    %266 = arith.addf %246, %265 : vector<3x1x16xf32>
    %267 = arith.subf %266, %264 : vector<3x1x16xf32>
    %cst_78 = arith.constant 9.99999997E-7 : f32
    %268 = vector.broadcast %cst_78 : f32 to vector<3x1x16xf32>
    %269 = arith.maximumf %267, %268 : vector<3x1x16xf32>
    %270 = tpu.reciprocal %269 {approx = true} : vector<3x1x16xf32> -> vector<3x1x16xf32>
    %271 = arith.mulf %264, %270 : vector<3x1x16xf32>
    %272 = vector.broadcast %240 : vector<1x1x16xf32> to vector<3x1x16xf32>
    %273 = arith.maximumf %224, %272 : vector<3x1x16xf32>
    %274 = vector.broadcast %234 : vector<1x1x16xf32> to vector<3x1x16xf32>
    %275 = arith.minimumf %218, %274 : vector<3x1x16xf32>
    %276 = arith.subf %273, %275 : vector<3x1x16xf32>
    %277 = vector.broadcast %243 : vector<1x1x16xf32> to vector<3x1x16xf32>
    %278 = arith.maximumf %227, %277 : vector<3x1x16xf32>
    %279 = vector.broadcast %237 : vector<1x1x16xf32> to vector<3x1x16xf32>
    %280 = arith.minimumf %221, %279 : vector<3x1x16xf32>
    %281 = arith.subf %278, %280 : vector<3x1x16xf32>
    %282 = arith.mulf %276, %281 : vector<3x1x16xf32>
    %283 = arith.subf %282, %267 : vector<3x1x16xf32>
    %cst_79 = arith.constant 9.99999997E-7 : f32
    %284 = vector.broadcast %cst_79 : f32 to vector<3x1x16xf32>
    %285 = arith.maximumf %282, %284 : vector<3x1x16xf32>
    %286 = tpu.reciprocal %285 {approx = true} : vector<3x1x16xf32> -> vector<3x1x16xf32>
    %287 = arith.mulf %283, %286 : vector<3x1x16xf32>
    %288 = arith.subf %271, %287 : vector<3x1x16xf32>
    %cst_80 = arith.constant 1.000000e+00 : f32
    %289 = vector.broadcast %cst_80 : f32 to vector<3x1x16xf32>
    %290 = arith.subf %289, %288 : vector<3x1x16xf32>
    %291 = vector.broadcast %120 : vector<1x1x16xf32> to vector<3x1x16xf32>
    %292 = arith.mulf %290, %291 : vector<3x1x16xf32>
    %293 = tpu.concatenate %32, %38, %48, %125, %130, %211, %292 in 1 : vector<3x1x16xf32>, vector<3x1x16xf32>, vector<3x2x16xf32>, vector<3x4x16xf32>, vector<3x4x16xf32>, vector<3x1x16xf32>, vector<3x1x16xf32> -> vector<3x14x16xf32>
    %cst_81 = arith.constant dense<0.000000e+00> : vector<3x14xf32>
    %294 = vector.multi_reduction <add>, %293, %cst_81 [2] : vector<3x14x16xf32> to vector<3x14xf32>
    %295 = vector.shape_cast %294 : vector<3x14xf32> to vector<3x14x1xf32>
    %296 = vector.shape_cast %29 : vector<1x16xf32> to vector<1x1x16xf32>
    %cst_82 = arith.constant dense<0.000000e+00> : vector<1xf32>
    %297 = vector.multi_reduction <add>, %296, %cst_82 [1, 2] : vector<1x1x16xf32> to vector<1xf32>
    %298 = vector.shape_cast %297 : vector<1xf32> to vector<1x1x1xf32>
    %299 = vector.extract %298[0, 0, 0] : f32 from vector<1x1x1xf32>
    %300 = vector.shape_cast %2 : vector<1x16xf32> to vector<1x1x16xf32>
    %cst_83 = arith.constant dense<0.000000e+00> : vector<1xf32>
    %301 = vector.multi_reduction <add>, %300, %cst_83 [1, 2] : vector<1x1x16xf32> to vector<1xf32>
    %302 = vector.shape_cast %301 : vector<1xf32> to vector<1x1x1xf32>
    %303 = vector.extract %302[0, 0, 0] : f32 from vector<1x1x1xf32>
    %304 = vector.shape_cast %119 : vector<1x16xf32> to vector<1x1x16xf32>
    %cst_84 = arith.constant dense<0.000000e+00> : vector<1xf32>
    %305 = vector.multi_reduction <add>, %304, %cst_84 [1, 2] : vector<1x1x16xf32> to vector<1xf32>
    %306 = vector.shape_cast %305 : vector<1xf32> to vector<1x1x1xf32>
    %307 = vector.extract %306[0, 0, 0] : f32 from vector<1x1x1xf32>
    %308 = vector.extract_strided_slice %295 {offsets = [0, 0, 0], sizes = [3, 1, 1], strides = [1, 1, 1]} : vector<3x14x1xf32> to vector<3x1x1xf32>
    %309 = vector.broadcast %299 : f32 to vector<3x1x1xf32>
    %310 = arith.divf %308, %309 : vector<3x1x1xf32>
    %311 = vector.extract_strided_slice %295 {offsets = [0, 1, 0], sizes = [3, 1, 1], strides = [1, 1, 1]} : vector<3x14x1xf32> to vector<3x1x1xf32>
    %cst_85 = arith.constant 1.000000e+02 : f32
    %312 = vector.broadcast %cst_85 : f32 to vector<3x1x1xf32>
    %313 = arith.mulf %312, %311 : vector<3x1x1xf32>
    %cst_86 = arith.constant 1.000000e+00 : f32
    %314 = arith.maximumf %303, %cst_86 : f32
    %315 = vector.broadcast %314 : f32 to vector<3x1x1xf32>
    %316 = arith.divf %313, %315 : vector<3x1x1xf32>
    %cst_87 = arith.constant 1.000000e+02 : f32
    %317 = vector.broadcast %cst_87 : f32 to vector<3x1x1xf32>
    %318 = arith.subf %317, %316 : vector<3x1x1xf32>
    %319 = vector.extract_strided_slice %295 {offsets = [0, 2, 0], sizes = [3, 2, 1], strides = [1, 1, 1]} : vector<3x14x1xf32> to vector<3x2x1xf32>
    %c0_88 = arith.constant 0 : index
    %c0_89 = arith.constant 0 : index
    %320 = vector.load %arg11[%c0_88, %c0_89] : memref<2x1xf32, #tpu.memory_space<vmem>>, vector<2x1xf32>
    %321 = vector.shape_cast %320 : vector<2x1xf32> to vector<1x2x1xf32>
    %322 = vector.broadcast %321 : vector<1x2x1xf32> to vector<3x2x1xf32>
    %323 = arith.subf %319, %322 : vector<3x2x1xf32>
    %324 = math.absf %323 : vector<3x2x1xf32>
    %cst_90 = arith.constant dense<0.000000e+00> : vector<3x1xf32>
    %325 = vector.multi_reduction <add>, %324, %cst_90 [1] : vector<3x2x1xf32> to vector<3x1xf32>
    %326 = vector.shape_cast %325 : vector<3x1xf32> to vector<3x1x1xf32>
    %cst_91 = arith.constant 2.000000e+00 : f32
    %327 = vector.broadcast %cst_91 : f32 to vector<3x1x1xf32>
    %328 = arith.divf %326, %327 : vector<3x1x1xf32>
    %329 = vector.extract_strided_slice %295 {offsets = [0, 4, 0], sizes = [3, 4, 1], strides = [1, 1, 1]} : vector<3x14x1xf32> to vector<3x4x1xf32>
    %cst_92 = arith.constant dense<0.000000e+00> : vector<3x1xf32>
    %330 = vector.multi_reduction <add>, %329, %cst_92 [1] : vector<3x4x1xf32> to vector<3x1xf32>
    %331 = vector.shape_cast %330 : vector<3x1xf32> to vector<3x1x1xf32>
    %332 = vector.broadcast %5 : f32 to vector<3x1x1xf32>
    %333 = arith.divf %331, %332 : vector<3x1x1xf32>
    %334 = vector.extract_strided_slice %295 {offsets = [0, 8, 0], sizes = [3, 4, 1], strides = [1, 1, 1]} : vector<3x14x1xf32> to vector<3x4x1xf32>
    %cst_93 = arith.constant dense<0.000000e+00> : vector<3x1xf32>
    %335 = vector.multi_reduction <add>, %334, %cst_93 [1] : vector<3x4x1xf32> to vector<3x1xf32>
    %336 = vector.shape_cast %335 : vector<3x1xf32> to vector<3x1x1xf32>
    %cst_94 = arith.constant 9.99999974E-5 : f32
    %337 = arith.addf %307, %cst_94 : f32
    %338 = vector.broadcast %337 : f32 to vector<3x1x1xf32>
    %339 = arith.divf %336, %338 : vector<3x1x1xf32>
    %340 = vector.extract_strided_slice %295 {offsets = [0, 12, 0], sizes = [3, 1, 1], strides = [1, 1, 1]} : vector<3x14x1xf32> to vector<3x1x1xf32>
    %341 = vector.broadcast %5 : f32 to vector<3x1x1xf32>
    %342 = arith.divf %340, %341 : vector<3x1x1xf32>
    %343 = vector.extract_strided_slice %295 {offsets = [0, 13, 0], sizes = [3, 1, 1], strides = [1, 1, 1]} : vector<3x14x1xf32> to vector<3x1x1xf32>
    %cst_95 = arith.constant 9.99999974E-5 : f32
    %344 = arith.addf %307, %cst_95 : f32
    %345 = vector.broadcast %344 : f32 to vector<3x1x1xf32>
    %346 = arith.divf %343, %345 : vector<3x1x1xf32>
    %347 = tpu.concatenate %310, %318, %328, %106, %333, %339, %342, %346 in 1 : vector<3x1x1xf32>, vector<3x1x1xf32>, vector<3x1x1xf32>, vector<3x1x1xf32>, vector<3x1x1xf32>, vector<3x1x1xf32>, vector<3x1x1xf32>, vector<3x1x1xf32> -> vector<3x8x1xf32>
    %348 = vector.shape_cast %347 : vector<3x8x1xf32> to vector<3x8x1xf32>
    %349 = vector.broadcast %348 : vector<3x8x1xf32> to vector<3x8x128xf32>
    %c0_96 = arith.constant 0 : index
    %c0_97 = arith.constant 0 : index
    %c0_98 = arith.constant 0 : index
    %350 = vector.load %arg13[%c0_96, %c0_97, %c0_98] : memref<3x8x128xf32, #tpu.memory_space<vmem>>, vector<3x8x128xf32>
    tpu.vector_store %arg13[%c0_96, %c0_97, %c0_98], %349 {strides = array<i32>} : memref<3x8x128xf32, #tpu.memory_space<vmem>>, vector<3x8x128xf32>,
    return
  }
  func.func @transform_0(%arg0: i32) -> (i32, i32, i32) {
    %c0_i32 = arith.constant 0 : i32
    %c0_i32_0 = arith.constant 0 : i32
    %c0_i32_1 = arith.constant 0 : i32
    return %arg0, %c0_i32, %c0_i32_0 : i32, i32, i32
  }
  func.func @transform_1(%arg0: i32) -> (i32, i32, i32) {
    %c0_i32 = arith.constant 0 : i32
    %c0_i32_0 = arith.constant 0 : i32
    %c0_i32_1 = arith.constant 0 : i32
    return %arg0, %c0_i32, %c0_i32_0 : i32, i32, i32
  }
  func.func @transform_2(%arg0: i32) -> (i32, i32, i32) {
    %c0_i32 = arith.constant 0 : i32
    %c0_i32_0 = arith.constant 0 : i32
    %c0_i32_1 = arith.constant 0 : i32
    return %arg0, %c0_i32, %c0_i32_0 : i32, i32, i32
  }
  func.func @transform_3(%arg0: i32) -> (i32, i32, i32) {
    %c0_i32 = arith.constant 0 : i32
    %c0_i32_0 = arith.constant 0 : i32
    %c0_i32_1 = arith.constant 0 : i32
    return %arg0, %c0_i32, %c0_i32_0 : i32, i32, i32
  }
  func.func @transform_4(%arg0: i32) -> (i32, i32) {
    %c0_i32 = arith.constant 0 : i32
    %c0_i32_0 = arith.constant 0 : i32
    %c0_i32_1 = arith.constant 0 : i32
    return %c0_i32, %c0_i32_0 : i32, i32
  }
  func.func @transform_5(%arg0: i32) -> (i32, i32) {
    %c0_i32 = arith.constant 0 : i32
    %c0_i32_0 = arith.constant 0 : i32
    %c0_i32_1 = arith.constant 0 : i32
    return %c0_i32, %c0_i32_0 : i32, i32
  }
  func.func @transform_6(%arg0: i32) -> (i32, i32) {
    %c0_i32 = arith.constant 0 : i32
    %c0_i32_0 = arith.constant 0 : i32
    %c0_i32_1 = arith.constant 0 : i32
    return %c0_i32, %c0_i32_0 : i32, i32
  }
  func.func @transform_7(%arg0: i32) -> (i32, i32) {
    %c0_i32 = arith.constant 0 : i32
    %c0_i32_0 = arith.constant 0 : i32
    %c0_i32_1 = arith.constant 0 : i32
    return %c0_i32, %c0_i32_0 : i32, i32
  }
  func.func @transform_8(%arg0: i32) -> (i32, i32) {
    %c0_i32 = arith.constant 0 : i32
    %c0_i32_0 = arith.constant 0 : i32
    %c0_i32_1 = arith.constant 0 : i32
    return %c0_i32, %c0_i32_0 : i32, i32
  }
  func.func @transform_9(%arg0: i32) -> (i32, i32) {
    %c0_i32 = arith.constant 0 : i32
    %c0_i32_0 = arith.constant 0 : i32
    %c0_i32_1 = arith.constant 0 : i32
    return %c0_i32, %c0_i32_0 : i32, i32
  }
  func.func @transform_10(%arg0: i32) -> (i32, i32) {
    %c0_i32 = arith.constant 0 : i32
    %c0_i32_0 = arith.constant 0 : i32
    %c0_i32_1 = arith.constant 0 : i32
    return %c0_i32, %c0_i32_0 : i32, i32
  }
  func.func @transform_11(%arg0: i32) -> (i32, i32) {
    %c0_i32 = arith.constant 0 : i32
    %c0_i32_0 = arith.constant 0 : i32
    %c0_i32_1 = arith.constant 0 : i32
    return %c0_i32, %c0_i32_0 : i32, i32
  }
  func.func @transform_12(%arg0: i32) -> (i32, i32, i32) {
    %c0_i32 = arith.constant 0 : i32
    %c0_i32_0 = arith.constant 0 : i32
    %c0_i32_1 = arith.constant 0 : i32
    return %arg0, %c0_i32, %c0_i32_0 : i32, i32, i32
  }
}

</mosaic_0001>

<llo_original>
// kernel: tpu_custom_call.1
$region0: #{tpu_custom_call.1}
  #allocation0 [shape = 'u32[]', space=smem, size = 0x4, offset = 0x4, fixed_abs, tag = 'smem constant byte address 0x4 - core index']
  #allocation1 [shape = 'u32[144,128]{1,0:T(1,128)}', space=vmem, size = 0x12000, scoped, tag = 'internal scratch']
  #allocation2 [shape = 'f32[1,1]{1,0:T(1,128)S(1)}', space=vmem, size = 0x200, scoped, tag = 'scoped memory for tpu_custom_call.1']
  %s0 = inlined_call_operand.vmem [shape: f32[3,5,16], index: 0, kind: input, shape index: {}]
  %s1 = inlined_call_operand.vmem [shape: f32[3,6,16], index: 1, kind: input, shape index: {}]
  %s2 = inlined_call_operand.vmem [shape: f32[3,4,16], index: 2, kind: input, shape index: {}]
  %s3 = inlined_call_operand.vmem [shape: f32[3,4,16], index: 3, kind: input, shape index: {}]
  %s4 = inlined_call_operand.hbm [shape: s32[1,16], index: 4, kind: input, shape index: {}]
  %s5 = inlined_call_operand.vmem [shape: f32[6,16], index: 5, kind: input, shape index: {}]
  %s6 = inlined_call_operand.vmem [shape: f32[4,16], index: 6, kind: input, shape index: {}]
  %s7 = inlined_call_operand.vmem [shape: f32[4,16], index: 7, kind: input, shape index: {}]
  %s8 = inlined_call_operand.vmem [shape: f32[1,16], index: 8, kind: input, shape index: {}]
  %s9 = inlined_call_operand.vmem [shape: f32[2,16], index: 9, kind: input, shape index: {}]
  %s10 = inlined_call_operand.vmem [shape: f32[2,1], index: 10, kind: input, shape index: {}]
  %s11 = inlined_call_operand.<no memory space> [shape: f32[1,1], index: 11, kind: input, shape index: {}]
  %s12 = inlined_call_operand.hbm [shape: f32[3,8,128], index: 12, kind: output, shape index: {}]
  %s13 = sld [smem:[#allocation0]]
  $region62: #{tpu_custom_call.1} parent=0
    _
  %s15 = ssub.s32 1, %s13
  %s16 = scalar_select 0, %s15, %s13
  %v17 = vstv %s11
  %18 = vst [vmem:[#allocation2] sm:$0x1] %v17
  $region1: #{tpu_custom_call.1} parent=0
    #allocation3 [shape = 'u8[512]{0}', space=vmem, size = 0x400, scoped, tag = 'input window, operand 4, single buffered']
    #allocation4 [shape = 's32[1]{0}', space=sflag, size = 0x4, scoped, tag = 'scoped memory for tpu_custom_call.1']
    #allocation5 [shape = 's32[1]{0}', space=sflag, size = 0x4, scoped, tag = 'scoped memory for tpu_custom_call.1']
    #allocation6 [shape = 'u8[12288]{0}', space=vmem, size = 0x3000, scoped, tag = 'output window, operand 0, single buffered']
    %19 = vsyncpa [#allocation4], 0
    %20 = vsyncpa [#allocation5], 0
    // Predicated region
    $region2: #{tpu_custom_call.1} parent=1 // pred_check
      _
    $region3: #{tpu_custom_call.1} parent=1 // pred_check_branch
      %22 = sbr.rel (0) target = $region5
    $region4: #{tpu_custom_call.1} parent=1 // pred_region
      _
    $region5: #{tpu_custom_call.1} parent=1 // pred_fallthru
      _
    // Predicated region
    $region6: #{tpu_custom_call.1} parent=1 // pred_check
      _
    $region7: #{tpu_custom_call.1} parent=1 // pred_check_branch
      %24 = sbr.rel (0) target = $region9
    $region8: #{tpu_custom_call.1} parent=1 // pred_region
      _
    $region9: #{tpu_custom_call.1} parent=1 // pred_fallthru
      _
    // Predicated region
    $region10: #{tpu_custom_call.1} parent=1 // pred_check
      _
    $region11: #{tpu_custom_call.1} parent=1 // pred_check_branch
      %26 = sbr.rel (0) target = $region13
    $region12: #{tpu_custom_call.1} parent=1 // pred_region
      _
    $region13: #{tpu_custom_call.1} parent=1 // pred_fallthru
      _
    // Predicated region
    $region14: #{tpu_custom_call.1} parent=1 // pred_check
      _
    $region15: #{tpu_custom_call.1} parent=1 // pred_check_branch
      %28 = sbr.rel (0) target = $region17
    $region16: #{tpu_custom_call.1} parent=1 // pred_region
      _
    $region17: #{tpu_custom_call.1} parent=1 // pred_fallthru
      _
    // Predicated region
    $region18: #{tpu_custom_call.1} parent=1 // pred_check
      _
    $region19: #{tpu_custom_call.1} parent=1 // pred_check_branch
      %30 = sbr.rel (0) target = $region21
    $region20: #{tpu_custom_call.1} parent=1 // pred_region
      %s32 = ssub.s32 16, 16
      %33 = vsyncadd [#allocation4], %s32
      %s35 = sshll.u32 [#allocation3], 4
      %s36 = int_to_ptr.vmem [resolvable:$true] %s35
      %38 = dma.hbm_to_vmem [thread:$0]  %s4, 16, %s36, [#allocation4]
    $region21: #{tpu_custom_call.1} parent=1 // pred_fallthru
      _
    // Predicated region
    $region22: #{tpu_custom_call.1} parent=1 // pred_check
      _
    $region23: #{tpu_custom_call.1} parent=1 // pred_check_branch
      %40 = sbr.rel (0) target = $region25
    $region24: #{tpu_custom_call.1} parent=1 // pred_region
      _
    $region25: #{tpu_custom_call.1} parent=1 // pred_fallthru
      _
    // Predicated region
    $region26: #{tpu_custom_call.1} parent=1 // pred_check
      _
    $region27: #{tpu_custom_call.1} parent=1 // pred_check_branch
      %42 = sbr.rel (0) target = $region29
    $region28: #{tpu_custom_call.1} parent=1 // pred_region
      _
    $region29: #{tpu_custom_call.1} parent=1 // pred_fallthru
      _
    // Predicated region
    $region30: #{tpu_custom_call.1} parent=1 // pred_check
      _
    $region31: #{tpu_custom_call.1} parent=1 // pred_check_branch
      %44 = sbr.rel (0) target = $region33
    $region32: #{tpu_custom_call.1} parent=1 // pred_region
      _
    $region33: #{tpu_custom_call.1} parent=1 // pred_fallthru
      _
    // Predicated region
    $region34: #{tpu_custom_call.1} parent=1 // pred_check
      _
    $region35: #{tpu_custom_call.1} parent=1 // pred_check_branch
      %46 = sbr.rel (0) target = $region37
    $region36: #{tpu_custom_call.1} parent=1 // pred_region
      _
    $region37: #{tpu_custom_call.1} parent=1 // pred_fallthru
      _
    // Predicated region
    $region38: #{tpu_custom_call.1} parent=1 // pred_check
      _
    $region39: #{tpu_custom_call.1} parent=1 // pred_check_branch
      %48 = sbr.rel (0) target = $region41
    $region40: #{tpu_custom_call.1} parent=1 // pred_region
      _
    $region41: #{tpu_custom_call.1} parent=1 // pred_fallthru
      _
    // Predicated region
    $region42: #{tpu_custom_call.1} parent=1 // pred_check
      _
    $region43: #{tpu_custom_call.1} parent=1 // pred_check_branch
      %50 = sbr.rel (0) target = $region45
    $region44: #{tpu_custom_call.1} parent=1 // pred_region
      _
    $region45: #{tpu_custom_call.1} parent=1 // pred_fallthru
      _
    // Predicated region
    $region46: #{tpu_custom_call.1} parent=1 // pred_check
      _
    $region47: #{tpu_custom_call.1} parent=1 // pred_check_branch
      %52 = sbr.rel (0) target = $region49
    $region48: #{tpu_custom_call.1} parent=1 // pred_region
      _
    $region49: #{tpu_custom_call.1} parent=1 // pred_fallthru
      _
    // Predicated region
    $region50: #{tpu_custom_call.1} parent=1 // pred_check
      _
    $region51: #{tpu_custom_call.1} parent=1 // pred_check_branch
      %54 = sbr.rel (0) target = $region53
    $region52: #{tpu_custom_call.1} parent=1 // pred_region
      %55 = dma.done [#allocation4], 16
    $region53: #{tpu_custom_call.1} parent=1 // pred_fallthru
      _
    %v56 = vld [vmem:[%s0] sm:$0x1f]
    %v57 = vld [vmem:[%s0 + $0x8] sm:$0x1f]
    %v58 = vld [vmem:[%s0 + $0x10] sm:$0x1f]
    %v59 = vld [vmem:[#allocation3] sm:$0x1]
    %v60 = vld [vmem:[%s8] sm:$0x1]
    %v61 = vld [vmem:[#allocation2] sm:$0x1]
    %s62 = vtos %v61
    %vm63 = vcmask 126976
    %v64 = vsel %vm63, %v56, -inf
    %v65 = vrot.slane %v64, 4
    %v66 = vmax.f32 %v64, %v65
    %v67 = vrot.slane %v66, 2
    %v68 = vmax.f32 %v66, %v67
    %v69 = vrot.slane %v68, 1
    %v70 = vmax.f32 %v68, %v69
    %v71 = vsel %vm63, %v57, -inf
    %v72 = vrot.slane %v71, 4
    %v73 = vmax.f32 %v71, %v72
    %v74 = vrot.slane %v73, 2
    %v75 = vmax.f32 %v73, %v74
    %v76 = vrot.slane %v75, 1
    %v77 = vmax.f32 %v75, %v76
    %v78 = vsel %vm63, %v58, -inf
    %v79 = vrot.slane %v78, 4
    %v80 = vmax.f32 %v78, %v79
    %v81 = vrot.slane %v80, 2
    %v82 = vmax.f32 %v80, %v81
    %v83 = vrot.slane %v82, 1
    %v84 = vmax.f32 %v82, %v83
    %v85 = vsub.f32 %v56, %v70
    %v86 = vsub.f32 %v57, %v77
    %v87 = vsub.f32 %v58, %v84
    %v88 = vmul.f32 %v85, 1.442695
    %v89 = vpow.pop %v88
    %v90 = vmul.f32 %v86, 1.442695
    %v91 = vpow.pop %v90
    %v92 = vmul.f32 %v87, 1.442695
    %v93 = vpow.pop %v92
    %v94 = vsel %vm63, %v89, 0.0
    %v95 = vrot.slane %v94, 4
    %v96 = vadd.f32 %v94, %v95
    %v97 = vrot.slane %v96, 2
    %v98 = vadd.f32 %v96, %v97
    %v99 = vrot.slane %v98, 1
    %v100 = vadd.f32 %v98, %v99
    %v101 = vsel %vm63, %v91, 0.0
    %v102 = vrot.slane %v101, 4
    %v103 = vadd.f32 %v101, %v102
    %v104 = vrot.slane %v103, 2
    %v105 = vadd.f32 %v103, %v104
    %v106 = vrot.slane %v105, 1
    %v107 = vadd.f32 %v105, %v106
    %v108 = vsel %vm63, %v93, 0.0
    %v109 = vrot.slane %v108, 4
    %v110 = vadd.f32 %v108, %v109
    %v111 = vrot.slane %v110, 2
    %v112 = vadd.f32 %v110, %v111
    %v113 = vrot.slane %v112, 1
    %v114 = vadd.f32 %v112, %v113
    %v115 = vlog2.pop %v100
    %v116 = vmul.f32 %v115, 0.6931472
    %v117 = vlog2.pop %v107
    %v118 = vmul.f32 %v117, 0.6931472
    %v119 = vlog2.pop %v114
    %v120 = vmul.f32 %v119, 0.6931472
    %v121 = vlaneseq
    %v122 = vshrl.u32 %v121, 7
    %v123 = vlaneseq
    %v124 = vshrl.u32 %v123, 7
    %v125 = vsub.s32 0, %v124
    %v126 = vrot.slane %v59, %v125
    %vm127 = vcmp.eq.s32.totalorder %v122, %v126
    %v128 = vsel %vm127, 1, 0
    %vm129 = vcmp.eq.s32.totalorder %v128, 1
    %v130 = vsel %vm129, %v85, 0.0
    %v131 = vsel %vm129, %v86, 0.0
    %v132 = vsel %vm129, %v87, 0.0
    %v133 = vsel %vm63, %v130, 0.0
    %v134 = vrot.slane %v133, 4
    %v135 = vadd.f32 %v133, %v134
    %v136 = vrot.slane %v135, 2
    %v137 = vadd.f32 %v135, %v136
    %v138 = vrot.slane %v137, 1
    %v139 = vadd.f32 %v137, %v138
    %v140 = vsel %vm63, %v131, 0.0
    %v141 = vrot.slane %v140, 4
    %v142 = vadd.f32 %v140, %v141
    %v143 = vrot.slane %v142, 2
    %v144 = vadd.f32 %v142, %v143
    %v145 = vrot.slane %v144, 1
    %v146 = vadd.f32 %v144, %v145
    %v147 = vsel %vm63, %v132, 0.0
    %v148 = vrot.slane %v147, 4
    %v149 = vadd.f32 %v147, %v148
    %v150 = vrot.slane %v149, 2
    %v151 = vadd.f32 %v149, %v150
    %v152 = vrot.slane %v151, 1
    %v153 = vadd.f32 %v151, %v152
    %v154 = vsub.f32 %v116, %v139
    %v155 = vsub.f32 %v118, %v146
    %v156 = vsub.f32 %v120, %v153
    %vm157 = vcmp.eq.s32.totalorder %v59, 4
    %v158 = vsel %vm157, 0.1, 1.0
    %v159 = vmul.f32 %v158, %v154
    %v160 = vmul.f32 %v158, %v155
    %v161 = vmul.f32 %v158, %v156
    %vm162 = vcmp.eq.f32.partialorder %v139, 0.0
    %vm163 = vcmp.eq.f32.partialorder %v146, 0.0
    %vm164 = vcmp.eq.f32.partialorder %v153, 0.0
    %v165 = vsel %vm162, %v60, 0.0
    %v166 = vsel %vm163, %v60, 0.0
    %v167 = vsel %vm164, %v60, 0.0
    %vm168 = vcmp.lt.f32.partialorder %v56, %v70
    %vm169 = vcmp.lt.f32.partialorder %v57, %v77
    %vm170 = vcmp.lt.f32.partialorder %v58, %v84
    %v171 = vsel %vm168, 1.0, 0.0
    %v172 = vsel %vm169, 1.0, 0.0
    %v173 = vsel %vm170, 1.0, 0.0
    %v174 = vld [vmem:[%s9] sm:$0x3]
    %v175 = vlaneseq
    %v176 = vshrl.u32 %v175, 7
    %v177 = vsub.s32 4, %v176
    %v178 = vrot.slane %v171, %v177
    %v179 = vlaneseq
    %v180 = vshrl.u32 %v179, 7
    %v181 = vsub.s32 4, %v180
    %v182 = vrot.slane %v172, %v181
    %v183 = vlaneseq
    %v184 = vshrl.u32 %v183, 7
    %v185 = vsub.s32 4, %v184
    %v186 = vrot.slane %v173, %v185
    %v187 = vmul.f32 %v174, %v178
    %v188 = vmul.f32 %v174, %v182
    %v189 = vmul.f32 %v174, %v186
    %v190 = vld [vmem:[%s1] sm:$0x3f]
    %v191 = vld [vmem:[%s1 + $0x8] sm:$0x3f]
    %v192 = vld [vmem:[%s1 + $0x10] sm:$0x3f]
    %v193 = vld [vmem:[%s5] sm:$0x3f]
    %v194 = vxor.u32 %v190, 2147483648
    %v195 = vxor.u32 %v191, 2147483648
    %v196 = vxor.u32 %v192, 2147483648
    %v197 = vmul.f32 %v194, 1.442695
    %v198 = vpow.pop %v197
    %v199 = vmul.f32 %v195, 1.442695
    %v200 = vpow.pop %v199
    %v201 = vmul.f32 %v196, 1.442695
    %v202 = vpow.pop %v201
    %v203 = vadd.f32 %v198, 1.0
    %v204 = vadd.f32 %v200, 1.0
    %v205 = vadd.f32 %v202, 1.0
    %v206 = vrcp.pop %v203
    %v207 = vmul.f32 1.0, %v206
    %v208 = vrcp.pop %v204
    %v209 = vmul.f32 1.0, %v208
    %v210 = vrcp.pop %v205
    %v211 = vmul.f32 1.0, %v210
    %v212 = vsub.f32 0.0, %v190
    %v213 = vsub.f32 0.0, %v191
    %v214 = vsub.f32 0.0, %v192
    %v215 = vmax.f32 %v212, 0.0
    %v216 = vmax.f32 %v213, 0.0
    %v217 = vmax.f32 %v214, 0.0
    %v218 = vand.u32 2147483647, %v190
    %v219 = vand.u32 2147483647, %v191
    %v220 = vand.u32 2147483647, %v192
    %v221 = vsub.f32 0.0, %v218
    %v222 = vsub.f32 0.0, %v219
    %v223 = vsub.f32 0.0, %v220
    %v224 = vmul.f32 %v221, 1.442695
    %v225 = vpow.pop %v224
    %v226 = vmul.f32 %v222, 1.442695
    %v227 = vpow.pop %v226
    %v228 = vmul.f32 %v223, 1.442695
    %v229 = vpow.pop %v228
    %v230 = vadd.f32 %v225, 1.0
    %v231 = vadd.f32 %v227, 1.0
    %v232 = vadd.f32 %v229, 1.0
    %v233 = vlog2.pop %v230
    %v234 = vmul.f32 %v233, 0.6931472
    %v235 = vlog2.pop %v231
    %v236 = vmul.f32 %v235, 0.6931472
    %v237 = vlog2.pop %v232
    %v238 = vmul.f32 %v237, 0.6931472
    %v239 = vadd.f32 %v215, %v234
    %v240 = vadd.f32 %v216, %v236
    %v241 = vadd.f32 %v217, %v238
    %v242 = vsub.f32 0.0, %v239
    %v243 = vsub.f32 0.0, %v240
    %v244 = vsub.f32 0.0, %v241
    %v245 = vsub.f32 %v242, %v190
    %v246 = vsub.f32 %v243, %v191
    %v247 = vsub.f32 %v244, %v192
    %vm248 = vcmp.eq.f32.partialorder %v193, 1.0
    %v249 = vsub.f32 1.0, %v207
    %v250 = vsub.f32 1.0, %v209
    %v251 = vsub.f32 1.0, %v211
    %v252 = vmul.f32 %v249, %v249
    %v253 = vmul.f32 %v250, %v250
    %v254 = vmul.f32 %v251, %v251
    %v255 = vmul.f32 %v242, %v252
    %v256 = vmul.f32 %v243, %v253
    %v257 = vmul.f32 %v244, %v254
    %vm258 = vcmp.lt.f32.partialorder %v193, 1.0
    %v259 = vmul.f32 %v207, %v207
    %v260 = vmul.f32 %v209, %v209
    %v261 = vmul.f32 %v211, %v211
    %v262 = vmul.f32 %v245, %v259
    %v263 = vmul.f32 %v246, %v260
    %v264 = vmul.f32 %v247, %v261
    %v265 = vsel %vm258, 1, 0
    %vm266 = vcmp.eq.s32.totalorder %v265, 1
    %v267 = vsel %vm266, %v262, 0.0
    %v268 = vsel %vm266, %v263, 0.0
    %v269 = vsel %vm266, %v264, 0.0
    %v270 = vsel %vm248, 1, 0
    %vm271 = vcmp.eq.s32.totalorder %v270, 1
    %v272 = vsel %vm271, %v255, %v267
    %v273 = vsel %vm271, %v256, %v268
    %v274 = vsel %vm271, %v257, %v269
    %v275 = vsel %vm248, 1.0, 0.0
    %vm276 = vcmask 128000
    %v277 = vsel %vm276, %v275, 0.0
    %278 = vadd.xlane.f32.xlu0 %v277
    %v279 = vpop.xlane.xlu0 %278
    %v280 = vrot.slane %v279, 4
    %v281 = vadd.f32 %v279, %v280
    %v282 = vrot.slane %v281, 2
    %v283 = vadd.f32 %v281, %v282
    %v284 = vrot.slane %v283, 1
    %v285 = vadd.f32 %v283, %v284
    %s286 = vtos %v285
    %v287 = vsel %vm276, %v272, 0.0
    %288 = vadd.xlane.f32.xlu0 %v287
    %v289 = vpop.xlane.xlu0 %288
    %v290 = vsel %vm276, %v273, 0.0
    %291 = vadd.xlane.f32.xlu0 %v290
    %v292 = vpop.xlane.xlu0 %291
    %v293 = vsel %vm276, %v274, 0.0
    %294 = vadd.xlane.f32.xlu0 %v293
    %v295 = vpop.xlane.xlu0 %294
    %vm296 = vcmask 1045504
    %v297 = vsel %vm296, %v289, 0.0
    %v298 = vrot.slane %v297, 4
    %v299 = vadd.f32 %v297, %v298
    %v300 = vrot.slane %v299, 2
    %v301 = vadd.f32 %v299, %v300
    %v302 = vrot.slane %v301, 1
    %v303 = vadd.f32 %v301, %v302
    %v304 = vsel %vm296, %v292, 0.0
    %v305 = vrot.slane %v304, 4
    %v306 = vadd.f32 %v304, %v305
    %v307 = vrot.slane %v306, 2
    %v308 = vadd.f32 %v306, %v307
    %v309 = vrot.slane %v308, 1
    %v310 = vadd.f32 %v308, %v309
    %v311 = vsel %vm296, %v295, 0.0
    %v312 = vrot.slane %v311, 4
    %v313 = vadd.f32 %v311, %v312
    %v314 = vrot.slane %v313, 2
    %v315 = vadd.f32 %v313, %v314
    %v316 = vrot.slane %v315, 1
    %v317 = vadd.f32 %v315, %v316
    %v318 = vsub.f32 0.0, %v303
    %v319 = vsub.f32 0.0, %v310
    %v320 = vsub.f32 0.0, %v317
    %s321 = smax.f32 %s286, 1.0
    %v322 = vstv %s321
    %v323 = vrcp.pop %v322
    %v324 = vmul.f32 %v318, %v323
    %v325 = vmul.f32 %v319, %v323
    %v326 = vmul.f32 %v320, %v323
    %v327 = vld [vmem:[%s2] sm:$0xf]
    %v328 = vld [vmem:[%s2 + $0x4] sm:$0xf]
    %v329 = vld [vmem:[%s2 + $0x8] sm:$0xf]
    %v330 = vld [vmem:[%s3] sm:$0xf]
    %v331 = vld [vmem:[%s3 + $0x4] sm:$0xf]
    %v332 = vld [vmem:[%s3 + $0x8] sm:$0xf]
    %v333 = vld [vmem:[%s6] sm:$0xf]
    %v334 = vld [vmem:[%s7] sm:$0xf]
    %v335 = vand.u32 2147483647, %v334
    %vm336 = vcmask 125952
    %v337 = vsel %vm336, %v335, 0.0
    %v338 = vrot.slane %v337, 4
    %v339 = vadd.f32 %v337, %v338
    %v340 = vrot.slane %v339, 2
    %v341 = vadd.f32 %v339, %v340
    %v342 = vrot.slane %v341, 1
    %v343 = vadd.f32 %v341, %v342
    %vm344 = vcmp.gt.f32.partialorder %v343, 0.0
    %v345 = vsel %vm344, %v60, 0.0
    %v346 = vsub.f32 %v327, %v333
    %v347 = vsub.f32 %v328, %v333
    %v348 = vsub.f32 %v329, %v333
    %v349 = vand.u32 2147483647, %v346
    %v350 = vand.u32 2147483647, %v347
    %v351 = vand.u32 2147483647, %v348
    %v353 = vlaneseq
    %v354 = vshrl.u32 %v353, 7
    %v355 = vsub.s32 0, %v354
    %v356 = vrot.slane %v60, %v355
    %v358 = vmul.f32 %v349, %v356
    %v359 = vmul.f32 %v350, %v356
    %v360 = vmul.f32 %v351, %v356
    %v361 = vsub.f32 %v330, %v334
    %v362 = vsub.f32 %v331, %v334
    %v363 = vsub.f32 %v332, %v334
    %v364 = vand.u32 2147483647, %v361
    %v365 = vand.u32 2147483647, %v362
    %v366 = vand.u32 2147483647, %v363
    %v367 = vlaneseq
    %v368 = vshrl.u32 %v367, 7
    %v369 = vsub.s32 0, %v368
    %v370 = vrot.slane %v345, %v369
    %v371 = vmul.f32 %v364, %v370
    %v372 = vmul.f32 %v365, %v370
    %v373 = vmul.f32 %v366, %v370
    %v374 = vmul.f32 %v327, 0.5
    %v375 = vmul.f32 %v328, 0.5
    %v376 = vmul.f32 %v329, 0.5
    %v380 = vrot.slane %v374, 2
    %v381 = vrot.slane %v375, 2
    %v382 = vrot.slane %v376, 2
    %v386 = vsub.f32 %v327, %v380
    %v387 = vsub.f32 %v328, %v381
    %v388 = vsub.f32 %v329, %v382
    %v389 = vadd.f32 %v327, %v380
    %v390 = vadd.f32 %v328, %v381
    %v391 = vadd.f32 %v329, %v382
    %v392 = vmul.f32 %v333, 0.5
    %v394 = vrot.slane %v392, 2
    %v396 = vsub.f32 %v333, %v394
    %v397 = vadd.f32 %v333, %v394
    %v398 = vsub.f32 %v389, %v386
    %v399 = vsub.f32 %v390, %v387
    %v400 = vsub.f32 %v391, %v388
    %v404 = vrot.slane %v398, 1
    %v405 = vrot.slane %v399, 1
    %v406 = vrot.slane %v400, 1
    %v410 = vmul.f32 %v398, %v404
    %v411 = vmul.f32 %v399, %v405
    %v412 = vmul.f32 %v400, %v406
    %v413 = vsub.f32 %v397, %v396
    %v415 = vrot.slane %v413, 1
    %v417 = vmul.f32 %v413, %v415
    %v418 = vmin.f32 %v389, %v397
    %v419 = vmin.f32 %v390, %v397
    %v420 = vmin.f32 %v391, %v397
    %v421 = vmax.f32 %v386, %v396
    %v422 = vmax.f32 %v387, %v396
    %v423 = vmax.f32 %v388, %v396
    %v424 = vsub.f32 %v418, %v421
    %v425 = vsub.f32 %v419, %v422
    %v426 = vsub.f32 %v420, %v423
    %v427 = vmax.f32 %v424, 0.0
    %v428 = vmax.f32 %v425, 0.0
    %v429 = vmax.f32 %v426, 0.0
    %v433 = vrot.slane %v427, 1
    %v434 = vrot.slane %v428, 1
    %v435 = vrot.slane %v429, 1
    %v439 = vmul.f32 %v427, %v433
    %v440 = vmul.f32 %v428, %v434
    %v441 = vmul.f32 %v429, %v435
    %v442 = vadd.f32 %v410, %v417
    %v443 = vadd.f32 %v411, %v417
    %v444 = vadd.f32 %v412, %v417
    %v445 = vsub.f32 %v442, %v439
    %v446 = vsub.f32 %v443, %v440
    %v447 = vsub.f32 %v444, %v441
    %v448 = vmax.f32 %v445, 1e-06
    %v449 = vmax.f32 %v446, 1e-06
    %v450 = vmax.f32 %v447, 1e-06
    %v451 = vrcp.pop %v448
    %v452 = vrcp.pop %v449
    %v453 = vrcp.pop %v450
    %v454 = vmul.f32 %v439, %v451
    %v455 = vmul.f32 %v440, %v452
    %v456 = vmul.f32 %v441, %v453
    %v457 = vmax.f32 %v389, %v397
    %v458 = vmax.f32 %v390, %v397
    %v459 = vmax.f32 %v391, %v397
    %v460 = vmin.f32 %v386, %v396
    %v461 = vmin.f32 %v387, %v396
    %v462 = vmin.f32 %v388, %v396
    %v463 = vsub.f32 %v457, %v460
    %v464 = vsub.f32 %v458, %v461
    %v465 = vsub.f32 %v459, %v462
    %v469 = vrot.slane %v463, 1
    %v470 = vrot.slane %v464, 1
    %v471 = vrot.slane %v465, 1
    %v475 = vmul.f32 %v463, %v469
    %v476 = vmul.f32 %v464, %v470
    %v477 = vmul.f32 %v465, %v471
    %v478 = vsub.f32 %v475, %v445
    %v479 = vsub.f32 %v476, %v446
    %v480 = vsub.f32 %v477, %v447
    %v481 = vmax.f32 %v475, 1e-06
    %v482 = vmax.f32 %v476, 1e-06
    %v483 = vmax.f32 %v477, 1e-06
    %v484 = vrcp.pop %v481
    %v485 = vrcp.pop %v482
    %v486 = vrcp.pop %v483
    %v487 = vmul.f32 %v478, %v484
    %v488 = vmul.f32 %v479, %v485
    %v489 = vmul.f32 %v480, %v486
    %v490 = vsub.f32 %v454, %v487
    %v491 = vsub.f32 %v455, %v488
    %v492 = vsub.f32 %v456, %v489
    %v493 = vsub.f32 1.0, %v490
    %v494 = vsub.f32 1.0, %v491
    %v495 = vsub.f32 1.0, %v492
    %v496 = vmul.f32 %v493, %v60
    %v497 = vmul.f32 %v494, %v60
    %v498 = vmul.f32 %v495, %v60
    %v499 = vmul.f32 %v330, 0.5
    %v500 = vmul.f32 %v331, 0.5
    %v501 = vmul.f32 %v332, 0.5
    %v505 = vrot.slane %v499, 2
    %v506 = vrot.slane %v500, 2
    %v507 = vrot.slane %v501, 2
    %v511 = vsub.f32 %v330, %v505
    %v512 = vsub.f32 %v331, %v506
    %v513 = vsub.f32 %v332, %v507
    %v514 = vadd.f32 %v330, %v505
    %v515 = vadd.f32 %v331, %v506
    %v516 = vadd.f32 %v332, %v507
    %v517 = vmul.f32 %v334, 0.5
    %v519 = vrot.slane %v517, 2
    %v521 = vsub.f32 %v334, %v519
    %v522 = vadd.f32 %v334, %v519
    %v523 = vsub.f32 %v514, %v511
    %v524 = vsub.f32 %v515, %v512
    %v525 = vsub.f32 %v516, %v513
    %v529 = vrot.slane %v523, 1
    %v530 = vrot.slane %v524, 1
    %v531 = vrot.slane %v525, 1
    %v535 = vmul.f32 %v523, %v529
    %v536 = vmul.f32 %v524, %v530
    %v537 = vmul.f32 %v525, %v531
    %v538 = vsub.f32 %v522, %v521
    %v540 = vrot.slane %v538, 1
    %v542 = vmul.f32 %v538, %v540
    %v543 = vmin.f32 %v514, %v522
    %v544 = vmin.f32 %v515, %v522
    %v545 = vmin.f32 %v516, %v522
    %v546 = vmax.f32 %v511, %v521
    %v547 = vmax.f32 %v512, %v521
    %v548 = vmax.f32 %v513, %v521
    %v549 = vsub.f32 %v543, %v546
    %v550 = vsub.f32 %v544, %v547
    %v551 = vsub.f32 %v545, %v548
    %v552 = vmax.f32 %v549, 0.0
    %v553 = vmax.f32 %v550, 0.0
    %v554 = vmax.f32 %v551, 0.0
    %v558 = vrot.slane %v552, 1
    %v559 = vrot.slane %v553, 1
    %v560 = vrot.slane %v554, 1
    %v564 = vmul.f32 %v552, %v558
    %v565 = vmul.f32 %v553, %v559
    %v566 = vmul.f32 %v554, %v560
    %v567 = vadd.f32 %v535, %v542
    %v568 = vadd.f32 %v536, %v542
    %v569 = vadd.f32 %v537, %v542
    %v570 = vsub.f32 %v567, %v564
    %v571 = vsub.f32 %v568, %v565
    %v572 = vsub.f32 %v569, %v566
    %v573 = vmax.f32 %v570, 1e-06
    %v574 = vmax.f32 %v571, 1e-06
    %v575 = vmax.f32 %v572, 1e-06
    %v576 = vrcp.pop %v573
    %v577 = vrcp.pop %v574
    %v578 = vrcp.pop %v575
    %v579 = vmul.f32 %v564, %v576
    %v580 = vmul.f32 %v565, %v577
    %v581 = vmul.f32 %v566, %v578
    %v582 = vmax.f32 %v514, %v522
    %v583 = vmax.f32 %v515, %v522
    %v584 = vmax.f32 %v516, %v522
    %v585 = vmin.f32 %v511, %v521
    %v586 = vmin.f32 %v512, %v521
    %v587 = vmin.f32 %v513, %v521
    %v588 = vsub.f32 %v582, %v585
    %v589 = vsub.f32 %v583, %v586
    %v590 = vsub.f32 %v584, %v587
    %v594 = vrot.slane %v588, 1
    %v595 = vrot.slane %v589, 1
    %v596 = vrot.slane %v590, 1
    %v600 = vmul.f32 %v588, %v594
    %v601 = vmul.f32 %v589, %v595
    %v602 = vmul.f32 %v590, %v596
    %v603 = vsub.f32 %v600, %v570
    %v604 = vsub.f32 %v601, %v571
    %v605 = vsub.f32 %v602, %v572
    %v606 = vmax.f32 %v600, 1e-06
    %v607 = vmax.f32 %v601, 1e-06
    %v608 = vmax.f32 %v602, 1e-06
    %v609 = vrcp.pop %v606
    %v610 = vrcp.pop %v607
    %v611 = vrcp.pop %v608
    %v612 = vmul.f32 %v603, %v609
    %v613 = vmul.f32 %v604, %v610
    %v614 = vmul.f32 %v605, %v611
    %v615 = vsub.f32 %v579, %v612
    %v616 = vsub.f32 %v580, %v613
    %v617 = vsub.f32 %v581, %v614
    %v618 = vsub.f32 1.0, %v615
    %v619 = vsub.f32 1.0, %v616
    %v620 = vsub.f32 1.0, %v617
    %v621 = vmul.f32 %v618, %v345
    %v622 = vmul.f32 %v619, %v345
    %v623 = vmul.f32 %v620, %v345
    %v627 = vrot.slane %v165, 7
    %v628 = vrot.slane %v166, 7
    %v629 = vrot.slane %v167, 7
    %v636 = vrot.slane %v187, 6
    %v637 = vrot.slane %v188, 6
    %v638 = vrot.slane %v189, 6
    %v645 = vrot.slane %v358, 4
    %v646 = vrot.slane %v359, 4
    %v647 = vrot.slane %v360, 4
    %v654 = vrot.slane %v496, 4
    %v655 = vrot.slane %v497, 4
    %v656 = vrot.slane %v498, 4
    %v663 = vrot.slane %v621, 3
    %v664 = vrot.slane %v622, 3
    %v665 = vrot.slane %v623, 3
    %vm669 = vcmask 1040384
    %v670 = vsel %vm669, %v159, %v627
    %v671 = vsel %vm669, %v160, %v628
    %v672 = vsel %vm669, %v161, %v629
    %vm673 = vcmask 1041408
    %v674 = vsel %vm673, %v670, %v636
    %v675 = vsel %vm673, %v671, %v637
    %v676 = vsel %vm673, %v672, %v638
    %vm677 = vcmask 1043456
    %v678 = vsel %vm677, %v674, %v645
    %v679 = vsel %vm677, %v675, %v646
    %v680 = vsel %vm677, %v676, %v647
    %v681 = vsel %vm677, %v371, %v654
    %v682 = vsel %vm677, %v372, %v655
    %v683 = vsel %vm677, %v373, %v656
    %vm684 = vcmask 1044480
    %v685 = vsel %vm684, %v681, %v663
    %v686 = vsel %vm684, %v682, %v664
    %v687 = vsel %vm684, %v683, %v665
    %vm688 = vcmask 130048
    %v689 = vsel %vm688, %v678, 0.0
    %690 = vadd.xlane.f32.xlu0 %v689
    %v691 = vpop.xlane.xlu0 %690
    %v692 = vsel %vm276, %v685, 0.0
    %693 = vadd.xlane.f32.xlu0 %v692
    %v694 = vpop.xlane.xlu0 %693
    %v695 = vsel %vm688, %v679, 0.0
    %696 = vadd.xlane.f32.xlu0 %v695
    %v697 = vpop.xlane.xlu0 %696
    %v698 = vsel %vm276, %v686, 0.0
    %699 = vadd.xlane.f32.xlu0 %v698
    %v700 = vpop.xlane.xlu0 %699
    %v701 = vsel %vm688, %v680, 0.0
    %702 = vadd.xlane.f32.xlu0 %v701
    %v703 = vpop.xlane.xlu0 %702
    %v704 = vsel %vm276, %v687, 0.0
    %705 = vadd.xlane.f32.xlu0 %v704
    %v706 = vpop.xlane.xlu0 %705
    %vm707 = vcmask 122880
    %v708 = vsel %vm707, %v158, 0.0
    %709 = vadd.xlane.f32.xlu0 %v708
    %v710 = vpop.xlane.xlu0 %709
    %v711 = vrot.slane %v710, 4
    %v712 = vadd.f32 %v710, %v711
    %v713 = vrot.slane %v712, 2
    %v714 = vadd.f32 %v712, %v713
    %v715 = vrot.slane %v714, 1
    %v716 = vadd.f32 %v714, %v715
    %s717 = vtos %v716
    %v718 = vsel %vm707, %v60, 0.0
    %719 = vadd.xlane.f32.xlu0 %v718
    %v720 = vpop.xlane.xlu0 %719
    %v721 = vrot.slane %v720, 4
    %v722 = vadd.f32 %v720, %v721
    %v723 = vrot.slane %v722, 2
    %v724 = vadd.f32 %v722, %v723
    %v725 = vrot.slane %v724, 1
    %v726 = vadd.f32 %v724, %v725
    %s727 = vtos %v726
    %v728 = vsel %vm707, %v345, 0.0
    %729 = vadd.xlane.f32.xlu0 %v728
    %v730 = vpop.xlane.xlu0 %729
    %v731 = vrot.slane %v730, 4
    %v732 = vadd.f32 %v730, %v731
    %v733 = vrot.slane %v732, 2
    %v734 = vadd.f32 %v732, %v733
    %v735 = vrot.slane %v734, 1
    %v736 = vadd.f32 %v734, %v735
    %s737 = vtos %v736
    %v738 = vstv %s717
    %v739 = vrcp.pop %v738
    %v740 = vmul.f32 %v691, %v739
    %v741 = vmul.f32 %v697, %v739
    %v742 = vmul.f32 %v703, %v739
    %v743 = vmul.f32 %v691, 100.0
    %v744 = vmul.f32 %v697, 100.0
    %v745 = vmul.f32 %v703, 100.0
    %s746 = smax.f32 %s727, 1.0
    %v747 = vstv %s746
    %v748 = vrcp.pop %v747
    %v749 = vmul.f32 %v743, %v748
    %v750 = vmul.f32 %v744, %v748
    %v751 = vmul.f32 %v745, %v748
    %v752 = vsub.f32 100.0, %v749
    %v753 = vsub.f32 100.0, %v750
    %v754 = vsub.f32 100.0, %v751
    %v755 = vld [vmem:[%s10] sm:$0x3]
    %v757 = vrot.slane %v755, 6
    %v759 = vsub.f32 %v691, %v757
    %v760 = vsub.f32 %v697, %v757
    %v761 = vsub.f32 %v703, %v757
    %v762 = vand.u32 2147483647, %v759
    %v763 = vand.u32 2147483647, %v760
    %v764 = vand.u32 2147483647, %v761
    %v768 = vrot.slane %v762, 2
    %v769 = vrot.slane %v763, 2
    %v770 = vrot.slane %v764, 2
    %vm774 = vcmask 1024
    %v775 = vsel %vm774, %v768, 0.0
    %v776 = vrot.slane %v775, 4
    %v777 = vadd.f32 %v775, %v776
    %v778 = vrot.slane %v777, 2
    %v779 = vadd.f32 %v777, %v778
    %v780 = vrot.slane %v779, 1
    %v781 = vadd.f32 %v779, %v780
    %v782 = vsel %vm774, %v769, 0.0
    %v783 = vrot.slane %v782, 4
    %v784 = vadd.f32 %v782, %v783
    %v785 = vrot.slane %v784, 2
    %v786 = vadd.f32 %v784, %v785
    %v787 = vrot.slane %v786, 1
    %v788 = vadd.f32 %v786, %v787
    %v789 = vsel %vm774, %v770, 0.0
    %v790 = vrot.slane %v789, 4
    %v791 = vadd.f32 %v789, %v790
    %v792 = vrot.slane %v791, 2
    %v793 = vadd.f32 %v791, %v792
    %v794 = vrot.slane %v793, 1
    %v795 = vadd.f32 %v793, %v794
    %v796 = vrcp.pop 2.0
    %v797 = vmul.f32 %v781, %v796
    %v798 = vmul.f32 %v788, %v796
    %v799 = vmul.f32 %v795, %v796
    %v803 = vrot.slane %v691, 4
    %v804 = vrot.slane %v697, 4
    %v805 = vrot.slane %v703, 4
    %v809 = vsel %vm677, %v803, 0.0
    %v810 = vrot.slane %v809, 4
    %v811 = vadd.f32 %v809, %v810
    %v812 = vrot.slane %v811, 2
    %v813 = vadd.f32 %v811, %v812
    %v814 = vrot.slane %v813, 1
    %v815 = vadd.f32 %v813, %v814
    %v816 = vsel %vm677, %v804, 0.0
    %v817 = vrot.slane %v816, 4
    %v818 = vadd.f32 %v816, %v817
    %v819 = vrot.slane %v818, 2
    %v820 = vadd.f32 %v818, %v819
    %v821 = vrot.slane %v820, 1
    %v822 = vadd.f32 %v820, %v821
    %v823 = vsel %vm677, %v805, 0.0
    %v824 = vrot.slane %v823, 4
    %v825 = vadd.f32 %v823, %v824
    %v826 = vrot.slane %v825, 2
    %v827 = vadd.f32 %v825, %v826
    %v828 = vrot.slane %v827, 1
    %v829 = vadd.f32 %v827, %v828
    %v830 = vstv %s62
    %v831 = vrcp.pop %v830
    %v832 = vmul.f32 %v815, %v831
    %v833 = vmul.f32 %v822, %v831
    %v834 = vmul.f32 %v829, %v831
    %v835 = vsel %vm677, %v694, 0.0
    %v836 = vrot.slane %v835, 4
    %v837 = vadd.f32 %v835, %v836
    %v838 = vrot.slane %v837, 2
    %v839 = vadd.f32 %v837, %v838
    %v840 = vrot.slane %v839, 1
    %v841 = vadd.f32 %v839, %v840
    %v842 = vsel %vm677, %v700, 0.0
    %v843 = vrot.slane %v842, 4
    %v844 = vadd.f32 %v842, %v843
    %v845 = vrot.slane %v844, 2
    %v846 = vadd.f32 %v844, %v845
    %v847 = vrot.slane %v846, 1
    %v848 = vadd.f32 %v846, %v847
    %v849 = vsel %vm677, %v706, 0.0
    %v850 = vrot.slane %v849, 4
    %v851 = vadd.f32 %v849, %v850
    %v852 = vrot.slane %v851, 2
    %v853 = vadd.f32 %v851, %v852
    %v854 = vrot.slane %v853, 1
    %v855 = vadd.f32 %v853, %v854
    %s856 = sadd.f32 %s737, 0.0001
    %v857 = vstv %s856
    %v858 = vrcp.pop %v857
    %v859 = vmul.f32 %v841, %v858
    %v860 = vmul.f32 %v848, %v858
    %v861 = vmul.f32 %v855, %v858
    %v862 = vmul.f32 %v694, %v831
    %v863 = vmul.f32 %v700, %v831
    %v864 = vmul.f32 %v706, %v831
    %v865 = vmul.f32 %v694, %v858
    %v866 = vmul.f32 %v700, %v858
    %v867 = vmul.f32 %v706, %v858
    %v871 = vrot.slane %v862, 6
    %v872 = vrot.slane %v863, 6
    %v873 = vrot.slane %v864, 6
    %v880 = vrot.slane %v865, 6
    %v881 = vrot.slane %v866, 6
    %v882 = vrot.slane %v867, 6
    %v886 = vsel %vm669, %v740, %v752
    %v887 = vsel %vm669, %v741, %v753
    %v888 = vsel %vm669, %v742, %v754
    %v889 = vsel %vm673, %v886, %v797
    %v890 = vsel %vm673, %v887, %v798
    %v891 = vsel %vm673, %v888, %v799
    %vm892 = vcmask 1042432
    %v893 = vsel %vm892, %v889, %v324
    %v894 = vsel %vm892, %v890, %v325
    %v895 = vsel %vm892, %v891, %v326
    %v896 = vsel %vm677, %v893, %v832
    %v897 = vsel %vm677, %v894, %v833
    %v898 = vsel %vm677, %v895, %v834
    %v899 = vsel %vm684, %v896, %v859
    %v900 = vsel %vm684, %v897, %v860
    %v901 = vsel %vm684, %v898, %v861
    %v902 = vsel %vm296, %v899, %v871
    %v903 = vsel %vm296, %v900, %v872
    %v904 = vsel %vm296, %v901, %v873
    %vm905 = vcmask 1046528
    %v906 = vsel %vm905, %v902, %v880
    %v907 = vsel %vm905, %v903, %v881
    %v908 = vsel %vm905, %v904, %v882
    %910 = vset.pattern.permute.xlu0 0
    %911 = vperm.xlu0 %910, %v906
    %v912 = vpop.permute.xlu0 %911
    %915 = vset.pattern.permute.xlu0 0
    %916 = vperm.xlu0 %915, %v907
    %v917 = vpop.permute.xlu0 %916
    %920 = vset.pattern.permute.xlu0 0
    %921 = vperm.xlu0 %920, %v908
    %v922 = vpop.permute.xlu0 %921
    %924 = vst [vmem:[#allocation6] sm:$0xff] %v912
    %925 = vst [vmem:[#allocation6 + $0x8] sm:$0xff] %v917
    %926 = vst [vmem:[#allocation6 + $0x10] sm:$0xff] %v922
    // Predicated region
    $region54: #{tpu_custom_call.1} parent=1 // pred_check
      _
    $region55: #{tpu_custom_call.1} parent=1 // pred_check_branch
      %928 = sbr.rel (0) target = $region57
    $region56: #{tpu_custom_call.1} parent=1 // pred_region
      %s930 = ssub.s32 384, 384
      %931 = vsyncadd [#allocation5], %s930
      %s932 = sshll.u32 [#allocation6], 4
      %s933 = int_to_ptr.vmem [resolvable:$true] %s932
      %938 = dma.vmem_to_hbm [thread:$0]  %s933, 384, %s12, [#allocation5], 128, 128, 8
    $region57: #{tpu_custom_call.1} parent=1 // pred_fallthru
      _
    // Predicated region
    $region58: #{tpu_custom_call.1} parent=1 // pred_check
      _
    $region59: #{tpu_custom_call.1} parent=1 // pred_check_branch
      %940 = sbr.rel (0) target = $region61
    $region60: #{tpu_custom_call.1} parent=1 // pred_region
      %941 = dma.done [#allocation5], 384
    $region61: #{tpu_custom_call.1} parent=1 // pred_fallthru
      _
    %942 = vsyncpa [#allocation4], 1
    %943 = vsyncpa [#allocation5], 1

</llo_original>
